<compile_context>
chip_gen: v7x
topology: tpu7x:2x2x1
jax: 0.10.0
libtpu: 0.0.40
codegen_flags: <defaults>
</compile_context>

<pallas_src>
import math
import functools

import numpy as np
import jax
import jax.numpy as jnp
from jax.experimental import pallas as pl
from jax.experimental.pallas import tpu as pltpu


# ----------------------------------------------------------------------------
# helpers
# ----------------------------------------------------------------------------
def _pick_tile(n, preferred, align):
    """Largest tile <= preferred that divides n and is a multiple of `align`
    (falls back to the full extent, which is always a legal block)."""
    if n <= preferred:
        return n
    t = (preferred // align) * align
    while t >= align:
        if n % t == 0:
            return t
        t -= align
    return n


def _half_rotated_perm(num_heads, head_dim):
    """Column permutation turning each head's interleaved (re,im,re,im,...)
    output layout into the half-rotated [re... | im...] layout, so RoPE is a
    half-width lane swap + multiply-add (applied offline to wq/wk columns)."""
    half = head_dim // 2
    idx = []
    for h in range(num_heads):
        base = h * head_dim
        idx.extend((base + 2 * np.arange(half)).tolist())
        idx.extend((base + 2 * np.arange(half) + 1).tolist())
    return np.asarray(idx, dtype=np.int32)


# ----------------------------------------------------------------------------
# Kernel 1: fused tiled QKV projection + rotary embedding (+ q-scale folding)
# ----------------------------------------------------------------------------
def _qkv_rope_kernel(x_ref, w_ref, cos_ref, sin_ref, q_out, k_out, v_out, acc,
                     *, n_heads, n_kv_heads, head_dim, q_scale):
    kk = pl.program_id(1)

    @pl.when(kk == 0)
    def _init():
        acc[...] = jnp.zeros_like(acc)

    acc[...] += jnp.dot(x_ref[...], w_ref[...],
                        preferred_element_type=jnp.float32)

    @pl.when(kk == pl.num_programs(1) - 1)
    def _finalize():
        half = head_dim // 2
        dq = n_heads * head_dim
        dkv = n_kv_heads * head_dim
        cos = cos_ref[...]          # (tm, head_dim) f32, [cos | cos]
        sin = sin_ref[...]          # (tm, head_dim) f32, sign-folded [-sin | +sin]

        def rope(t):                # t: (tm, head_dim) f32, half-rotated layout
            rot = jnp.concatenate([t[:, half:], t[:, :half]], axis=1)
            return t * cos + rot * sin

        for h in range(n_heads):
            sl = slice(h * head_dim, (h + 1) * head_dim)
            q_out[:, sl] = (rope(acc[:, sl]) * q_scale).astype(q_out.dtype)
        for h in range(n_kv_heads):
            k = acc[:, dq + h * head_dim: dq + (h + 1) * head_dim]
            k_out[:, h * head_dim:(h + 1) * head_dim] = rope(k).astype(k_out.dtype)
        v_out[...] = acc[:, dq + dkv: dq + 2 * dkv].astype(v_out.dtype)


def qkv_rope(x_flat, w_qkv_t, cos_rows, sin_rows, n_heads, n_kv_heads, head_dim):
    M, K = x_flat.shape
    dq = n_heads * head_dim
    dkv = n_kv_heads * head_dim
    N = dq + 2 * dkv
    assert w_qkv_t.shape == (K, N)
    tm = _pick_tile(M, 512, 16)     # big M tile -> less weight re-streaming
    tk = _pick_tile(K, 256, 128)    # moderate K tile -> fits v7x 64 MiB VMEM
    grid = (M // tm, K // tk)
    kernel = functools.partial(_qkv_rope_kernel, n_heads=n_heads,
                               n_kv_heads=n_kv_heads, head_dim=head_dim,
                               q_scale=1.0 / math.sqrt(head_dim))
    flops = 2 * M * K * N
    bytes_accessed = 2 * (M * K + (M // tm) * K * N + M * N) + 8 * M * head_dim
    return pl.pallas_call(
        kernel,
        out_shape=(jax.ShapeDtypeStruct((M, dq), jnp.bfloat16),
                   jax.ShapeDtypeStruct((M, dkv), jnp.bfloat16),
                   jax.ShapeDtypeStruct((M, dkv), jnp.bfloat16)),
        grid=grid,
        in_specs=[
            pl.BlockSpec((tm, tk), lambda i, k: (i, k)),
            pl.BlockSpec((tk, N), lambda i, k: (k, 0)),
            pl.BlockSpec((tm, head_dim), lambda i, k: (i, 0)),
            pl.BlockSpec((tm, head_dim), lambda i, k: (i, 0)),
        ],
        out_specs=(
            pl.BlockSpec((tm, dq), lambda i, k: (i, 0)),
            pl.BlockSpec((tm, dkv), lambda i, k: (i, 0)),
            pl.BlockSpec((tm, dkv), lambda i, k: (i, 0)),
        ),
        scratch_shapes=[pltpu.VMEM((tm, N), jnp.float32)],
        compiler_params=pltpu.CompilerParams(
            dimension_semantics=("parallel", "arbitrary"),
            vmem_limit_bytes=40 * 1024 * 1024),
        cost_estimate=pl.CostEstimate(flops=int(flops), transcendentals=0,
                                      bytes_accessed=int(bytes_accessed)),
    )(x_flat, w_qkv_t, cos_rows, sin_rows)


# ----------------------------------------------------------------------------
# Kernel 2: flash-style GQA attention with q-tiling, causal block skipping,
#           scalar-prefetched start_pos, contiguous KV-cache layout.
# ----------------------------------------------------------------------------
def _flash_attn_kernel(start_ref, q_ref, k_ref, v_ref, o_ref,
                       m_scr, l_scr, acc_scr, *, n_rep, tq, t_kv, head_dim):
    qi = pl.program_id(2)
    t = pl.program_id(3)
    start = start_ref[0]
    rows = tq * n_rep

    @pl.when(t == 0)
    def _init():
        m_scr[...] = jnp.full_like(m_scr, -jnp.inf)
        l_scr[...] = jnp.zeros_like(l_scr)
        acc_scr[...] = jnp.zeros_like(acc_scr)

    kv_lo = t * t_kv
    q_hi = start + (qi + 1) * tq - 1

    @pl.when(kv_lo <= q_hi)          # skip KV blocks fully above the diagonal
    def _compute():
        # (tq, n_rep*D) -> (tq*n_rep, D), head-major rows, via sublane concat.
        if n_rep > 1:
            q = jnp.concatenate(
                [q_ref[:, r * head_dim:(r + 1) * head_dim] for r in range(n_rep)],
                axis=0)
        else:
            q = q_ref[...]
        k = k_ref[0, 0]              # (t_kv, D) bf16, contiguous slab
        v = v_ref[0, 0]
        s = jax.lax.dot_general(q, k, (((1,), (1,)), ((), ())),
                                preferred_element_type=jnp.float32)

        row_i = jax.lax.broadcasted_iota(jnp.int32, (rows, t_kv), 0)
        col_i = jax.lax.broadcasted_iota(jnp.int32, (rows, t_kv), 1)
        q_pos = start + qi * tq + row_i % tq
        k_pos = kv_lo + col_i
        # causal mask also hides the not-yet-written tail of the cache;
        # kv block 0 always has a valid column for every row, so m stays finite.
        s = jnp.where(k_pos <= q_pos, s, -1e30)

        m_prev = m_scr[...][:, :1]
        l_prev = l_scr[...][:, :1]
        m_new = jnp.maximum(m_prev, jnp.max(s, axis=-1, keepdims=True))
        alpha = jnp.exp(m_prev - m_new)
        # bf16 exponent (doubles EUP throughput on v6e/v7x), f32 accumulation.
        p = jnp.exp((s - m_new).astype(jnp.bfloat16))
        l_new = alpha * l_prev + jnp.sum(p.astype(jnp.float32), axis=-1,
                                         keepdims=True)
        acc_scr[...] = alpha * acc_scr[...] + jax.lax.dot_general(
            p, v, (((1,), (0,)), ((), ())), preferred_element_type=jnp.float32)
        m_scr[...] = jnp.broadcast_to(m_new, m_scr.shape)   # lane-dense store
        l_scr[...] = jnp.broadcast_to(l_new, l_scr.shape)

    @pl.when(t == pl.num_programs(3) - 1)
    def _finalize():
        o = acc_scr[...] / l_scr[...][:, :1]
        for r in range(n_rep):
            o_ref[:, r * head_dim:(r + 1) * head_dim] = (
                o[r * tq:(r + 1) * tq, :].astype(o_ref.dtype))


def attention_core(q_flat, cache_k, cache_v, start_arr, B, S,
                   n_heads, n_kv_heads, head_dim):
    n_rep = n_heads // n_kv_heads
    max_batch, nkv, max_seq, _ = cache_k.shape
    assert nkv == n_kv_heads
    # ~256 (token, head) rows per q tile keeps vreg pressure bounded.
    tq = _pick_tile(S, max(16, 256 // n_rep), 16)
    t_kv = _pick_tile(max_seq, 256, 16)
    nQ = S // tq
    nKV = max_seq // t_kv
    qo_blk = n_rep * head_dim
    rows = tq * n_rep

    def q_map(b, h, qi, t, sp):
        return (b * nQ + qi, h)

    def kv_map(b, h, qi, t, sp):
        # clamp skipped blocks to the last needed one -> no redundant DMA
        last = (sp[0] + (qi + 1) * tq - 1) // t_kv
        return (b, h, jnp.minimum(t, last), 0)

    kernel = functools.partial(_flash_attn_kernel, n_rep=n_rep, tq=tq,
                               t_kv=t_kv, head_dim=head_dim)
    flops = 4 * B * n_heads * S * max_seq * head_dim
    bytes_accessed = 2 * (2 * q_flat.size + cache_k.size + cache_v.size)
    return pl.pallas_call(
        kernel,
        out_shape=jax.ShapeDtypeStruct((B * S, n_heads * head_dim), jnp.bfloat16),
        grid_spec=pltpu.PrefetchScalarGridSpec(
            num_scalar_prefetch=1,
            grid=(B, n_kv_heads, nQ, nKV),
            in_specs=[
                pl.BlockSpec((tq, qo_blk), q_map),
                pl.BlockSpec((1, 1, t_kv, head_dim), kv_map),
                pl.BlockSpec((1, 1, t_kv, head_dim), kv_map),
            ],
            out_specs=pl.BlockSpec((tq, qo_blk), q_map),
            scratch_shapes=[pltpu.VMEM((rows, 128), jnp.float32),
                            pltpu.VMEM((rows, 128), jnp.float32),
                            pltpu.VMEM((rows, head_dim), jnp.float32)]),
        compiler_params=pltpu.CompilerParams(
            dimension_semantics=("parallel", "parallel", "parallel", "arbitrary"),
            vmem_limit_bytes=40 * 1024 * 1024),
        cost_estimate=pl.CostEstimate(
            flops=int(flops),
            transcendentals=int(B * n_heads * S * max_seq),
            bytes_accessed=int(bytes_accessed)),
    )(start_arr, q_flat, cache_k, cache_v)


# ----------------------------------------------------------------------------
# Kernel 3: tiled output projection  out = x @ Wo^T  (Wo passed pre-transposed)
# ----------------------------------------------------------------------------
def _matmul_kernel(x_ref, w_ref, o_ref, acc_ref):
    @pl.when(pl.program_id(2) == 0)
    def _init():
        acc_ref[...] = jnp.zeros_like(acc_ref)

    acc_ref[...] += jnp.dot(x_ref[...], w_ref[...],
                            preferred_element_type=jnp.float32)

    @pl.when(pl.program_id(2) == pl.num_programs(2) - 1)
    def _finalize():
        o_ref[...] = acc_ref[...].astype(o_ref.dtype)


def linear(x_flat, w_t, out_dtype=jnp.bfloat16):
    M, K = x_flat.shape
    N = w_t.shape[1]
    tm = _pick_tile(M, 512, 16)
    tn = _pick_tile(N, 512, 128)    # N axis: megacore parallelism at decode M
    tk = _pick_tile(K, 256, 128)
    grid = (M // tm, N // tn, K // tk)
    flops = 2 * M * K * N
    bytes_accessed = 2 * M * K + 2 * (M // tm) * K * N + 2 * M * N
    return pl.pallas_call(
        _matmul_kernel,
        out_shape=jax.ShapeDtypeStruct((M, N), out_dtype),
        grid=grid,
        in_specs=[pl.BlockSpec((tm, tk), lambda i, n, k: (i, k)),
                  pl.BlockSpec((tk, tn), lambda i, n, k: (k, n))],
        out_specs=pl.BlockSpec((tm, tn), lambda i, n, k: (i, n)),
        scratch_shapes=[pltpu.VMEM((tm, tn), jnp.float32)],
        compiler_params=pltpu.CompilerParams(
            dimension_semantics=("parallel", "parallel", "arbitrary"),
            vmem_limit_bytes=40 * 1024 * 1024),
        cost_estimate=pl.CostEstimate(flops=int(flops), transcendentals=0,
                                      bytes_accessed=int(bytes_accessed)),
    )(x_flat, w_t)


# ----------------------------------------------------------------------------
# Full Attention.forward (glue = cheap reshapes + cache update)
# ----------------------------------------------------------------------------
def attention_forward(params, x, start_pos, cos, sin, cache_k, cache_v,
                      n_heads, n_kv_heads, head_dim):
    B, S, dim = x.shape
    M = B * S
    x_flat = x.reshape(M, dim).astype(jnp.bfloat16)

    # Per-token rotary tables in the half-rotated layout; the rotate-half sign
    # is folded into sin ([-sin | +sin]) so in-kernel RoPE is mul-add only.
    cos_rows = jnp.tile(jnp.concatenate([cos, cos], axis=-1),
                        (B, 1)).astype(jnp.float32)
    sin_rows = jnp.tile(jnp.concatenate([-sin, sin], axis=-1),
                        (B, 1)).astype(jnp.float32)

    q_flat, k_flat, v_flat = qkv_rope(
        x_flat, params["w_qkv_t"], cos_rows, sin_rows,
        n_heads, n_kv_heads, head_dim)

    # KV cache laid out (max_batch, n_kv_heads, max_seq, head_dim) so the
    # attention kernel's K/V DMAs are contiguous slabs.
    # TODO(synk): for decode, alias the cache into the QKV kernel outputs
    # (input_output_aliases) to remove this XLA-level dynamic_update_slice.
    start = jnp.asarray(start_pos, jnp.int32)
    k_new = k_flat.reshape(B, S, n_kv_heads, head_dim).transpose(0, 2, 1, 3)
    v_new = v_flat.reshape(B, S, n_kv_heads, head_dim).transpose(0, 2, 1, 3)
    cache_k = jax.lax.dynamic_update_slice(
        cache_k, k_new.astype(cache_k.dtype), (0, 0, start, 0))
    cache_v = jax.lax.dynamic_update_slice(
        cache_v, v_new.astype(cache_v.dtype), (0, 0, start, 0))

    start_arr = jnp.reshape(start, (1,))
    o_flat = attention_core(q_flat, cache_k, cache_v, start_arr, B, S,
                            n_heads, n_kv_heads, head_dim)

    # bf16 output; the residual add downstream happens in the model's dtype.
    out = linear(o_flat, params["wo_t"], out_dtype=jnp.bfloat16)
    return out.reshape(B, S, dim), cache_k, cache_v


# ----------------------------------------------------------------------------
# pure-JAX f32 reference (mirrors the torch forward) for correctness check
# ----------------------------------------------------------------------------
def reference_forward(x, wq, wk, wv, wo, cos, sin, mask, cache_k, cache_v,
                      start_pos, n_heads, n_kv_heads, head_dim):
    B, S, dim = x.shape
    n_rep = n_heads // n_kv_heads
    xq = jnp.einsum("bsd,od->bso", x, wq).reshape(B, S, n_heads, head_dim)
    xk = jnp.einsum("bsd,od->bso", x, wk).reshape(B, S, n_kv_heads, head_dim)
    xv = jnp.einsum("bsd,od->bso", x, wv).reshape(B, S, n_kv_heads, head_dim)

    def rope(t):
        tr = t.reshape(*t.shape[:-1], head_dim // 2, 2)
        tre, tim = tr[..., 0], tr[..., 1]
        c = cos[None, :, None, :]
        s = sin[None, :, None, :]
        outre = tre * c - tim * s
        outim = tre * s + tim * c
        return jnp.stack([outre, outim], axis=-1).reshape(t.shape)

    xq, xk = rope(xq), rope(xk)
    cache_k = jax.lax.dynamic_update_slice(cache_k, xk, (0, start_pos, 0, 0))
    cache_v = jax.lax.dynamic_update_slice(cache_v, xv, (0, start_pos, 0, 0))
    keys = jnp.repeat(cache_k[:B, :start_pos + S], n_rep, axis=2)
    values = jnp.repeat(cache_v[:B, :start_pos + S], n_rep, axis=2)
    q = xq.transpose(0, 2, 1, 3)
    k = keys.transpose(0, 2, 1, 3)
    v = values.transpose(0, 2, 1, 3)
    scores = jnp.einsum("bhsd,bhtd->bhst", q, k) / math.sqrt(head_dim) + mask
    p = jax.nn.softmax(scores, axis=-1)
    o = jnp.einsum("bhst,bhtd->bhsd", p, v)
    o = o.transpose(0, 2, 1, 3).reshape(B, S, -1)
    return jnp.einsum("bso,do->bsd", o, wo)


# ----------------------------------------------------------------------------
if __name__ == "__main__":
    # small ModelArgs-consistent config (real llama3 head_dim=128 is kept);
    # S and max_seq_len are multiples of the (8,128)/bf16 tiling constraints.
    B, S = 2, 8
    dim = 512
    n_heads = 4
    n_kv_heads = 2
    head_dim = dim // n_heads           # 128
    max_seq_len = 16
    max_batch = 2
    start_pos = 0
    rope_theta = 500000.0

    key = jax.random.PRNGKey(0)
    kx, kq, kk_, kv_, ko = jax.random.split(key, 5)
    x = jax.random.normal(kx, (B, S, dim), dtype=jnp.float32)

    wq = 0.05 * jax.random.normal(kq, (n_heads * head_dim, dim), jnp.float32)
    wk = 0.05 * jax.random.normal(kk_, (n_kv_heads * head_dim, dim), jnp.float32)
    wv = 0.05 * jax.random.normal(kv_, (n_kv_heads * head_dim, dim), jnp.float32)
    wo = 0.05 * jax.random.normal(ko, (dim, n_heads * head_dim), jnp.float32)

    # offline weight prep: transpose, permute q/k columns to the half-rotated
    # RoPE layout, and fuse the three projections into one weight.
    perm_q = _half_rotated_perm(n_heads, head_dim)
    perm_k = _half_rotated_perm(n_kv_heads, head_dim)
    w_qkv_t = jnp.concatenate(
        [wq.T[:, perm_q], wk.T[:, perm_k], wv.T], axis=1).astype(jnp.bfloat16)
    params = {"w_qkv_t": w_qkv_t, "wo_t": wo.T.astype(jnp.bfloat16)}

    # precompute_freqs_cis equivalent (cos/sin halves of the complex freqs)
    freqs = 1.0 / (rope_theta ** (np.arange(0, head_dim, 2,
                                            dtype=np.float32) / head_dim))
    ang = np.outer(np.arange(max_seq_len, dtype=np.float32), freqs)
    cos = jnp.asarray(np.cos(ang))[start_pos:start_pos + S]   # (S, D/2)
    sin = jnp.asarray(np.sin(ang))[start_pos:start_pos + S]

    cache_k = jnp.zeros((max_batch, n_kv_heads, max_seq_len, head_dim),
                        jnp.bfloat16)
    cache_v = jnp.zeros((max_batch, n_kv_heads, max_seq_len, head_dim),
                        jnp.bfloat16)

    out, cache_k, cache_v = attention_forward(
        params, x, start_pos, cos, sin, cache_k, cache_v,
        n_heads, n_kv_heads, head_dim)
    out = jax.block_until_ready(out)

    # f32 reference with the explicit llama3 mask (kernel builds it in-kernel)
    mask_np = np.triu(np.full((S, S), float("-inf"), dtype=np.float32), k=1)
    mask = jnp.asarray(
        np.concatenate([np.zeros((S, start_pos), np.float32), mask_np], axis=1))
    ref_ck = jnp.zeros((max_batch, max_seq_len, n_kv_heads, head_dim),
                       jnp.float32)
    ref_cv = jnp.zeros((max_batch, max_seq_len, n_kv_heads, head_dim),
                       jnp.float32)
    ref = reference_forward(x, wq, wk, wv, wo, cos, sin, mask, ref_ck, ref_cv,
                            start_pos, n_heads, n_kv_heads, head_dim)
    ref = jax.block_until_ready(ref)

    np.testing.assert_allclose(np.asarray(out.astype(jnp.float32)),
                               np.asarray(ref), rtol=5e-2, atol=5e-2)
    print("KERNEL_OK")
</pallas_src>

<mosaic_0001>
module attributes {stable_mosaic.version = 11 : i64} {
  func.func @_qkv_rope_kernel(%arg0: i32, %arg1: i32, %arg2: memref<16x256xbf16, #tpu.memory_space<vmem>>, %arg3: memref<256x1024xbf16, #tpu.memory_space<vmem>>, %arg4: memref<16x128xf32, #tpu.memory_space<vmem>>, %arg5: memref<16x128xf32, #tpu.memory_space<vmem>>, %arg6: memref<16x512xbf16, #tpu.memory_space<vmem>>, %arg7: memref<16x256xbf16, #tpu.memory_space<vmem>>, %arg8: memref<16x256xbf16, #tpu.memory_space<vmem>>, %arg9: memref<16x1024xf32, #tpu.memory_space<vmem>>) attributes {dimension_semantics = [#tpu.dimension_semantics<parallel>, #tpu.dimension_semantics<arbitrary>], iteration_bounds = array<i64: 1, 2>, scalar_prefetch = 0 : i64, scratch_operands = 1 : i64, tpu.core_type = #tpu.core_type<tc>, window_params = [{transform_indices = @transform_0, window_bounds = array<i64: 16, 256>}, {transform_indices = @transform_1, window_bounds = array<i64: 256, 1024>}, {transform_indices = @transform_2, window_bounds = array<i64: 16, 128>}, {transform_indices = @transform_3, window_bounds = array<i64: 16, 128>}, {transform_indices = @transform_4, window_bounds = array<i64: 16, 512>}, {transform_indices = @transform_5, window_bounds = array<i64: 16, 256>}, {transform_indices = @transform_6, window_bounds = array<i64: 16, 256>}]} {
    %c0_i32 = arith.constant 0 : i32
    %0 = arith.cmpi eq, %arg1, %c0_i32 : i32
    %1 = arith.extui %0 : i1 to i32
    %c0_i32_0 = arith.constant 0 : i32
    %2 = arith.cmpi ne, %1, %c0_i32_0 : i32
    scf.if %2 {
      %cst_9 = arith.constant 0.000000e+00 : f32
      %12 = vector.broadcast %cst_9 : f32 to vector<16x1024xf32>
      %c0_10 = arith.constant 0 : index
      %c0_11 = arith.constant 0 : index
      %13 = vector.load %arg9[%c0_10, %c0_11] : memref<16x1024xf32, #tpu.memory_space<vmem>>, vector<16x1024xf32>
      tpu.vector_store %arg9[%c0_10, %c0_11], %12 {strides = array<i32>} : memref<16x1024xf32, #tpu.memory_space<vmem>>, vector<16x1024xf32>,
    } else {
    }
    %c0 = arith.constant 0 : index
    %c0_1 = arith.constant 0 : index
    %3 = vector.load %arg9[%c0, %c0_1] : memref<16x1024xf32, #tpu.memory_space<vmem>>, vector<16x1024xf32>
    %c0_2 = arith.constant 0 : index
    %c0_3 = arith.constant 0 : index
    %4 = vector.load %arg2[%c0_2, %c0_3] : memref<16x256xbf16, #tpu.memory_space<vmem>>, vector<16x256xbf16>
    %c0_4 = arith.constant 0 : index
    %c0_5 = arith.constant 0 : index
    %5 = vector.load %arg3[%c0_4, %c0_5] : memref<256x1024xbf16, #tpu.memory_space<vmem>>, vector<256x1024xbf16>
    %cst = arith.constant dense<0.000000e+00> : vector<16x1024xf32>
    %6 = tpu.matmul %4, %5, %cst {dimension_numbers = #tpu.dot_dimension_numbers<[1], [0], [0], [1], [0, 0, 1, 1], [], []>} : vector<16x256xbf16>, vector<256x1024xbf16>, vector<16x1024xf32> -> vector<16x1024xf32>
    %7 = arith.addf %3, %6 : vector<16x1024xf32>
    %c0_6 = arith.constant 0 : index
    %c0_7 = arith.constant 0 : index
    %8 = vector.load %arg9[%c0_6, %c0_7] : memref<16x1024xf32, #tpu.memory_space<vmem>>, vector<16x1024xf32>
    tpu.vector_store %arg9[%c0_6, %c0_7], %7 {strides = array<i32>} : memref<16x1024xf32, #tpu.memory_space<vmem>>, vector<16x1024xf32>,
    %c1_i32 = arith.constant 1 : i32
    %9 = arith.cmpi eq, %arg1, %c1_i32 : i32
    %10 = arith.extui %9 : i1 to i32
    %c0_i32_8 = arith.constant 0 : i32
    %11 = arith.cmpi ne, %10, %c0_i32_8 : i32
    scf.if %11 {
      %c0_9 = arith.constant 0 : index
      %c0_10 = arith.constant 0 : index
      %12 = vector.load %arg4[%c0_9, %c0_10] : memref<16x128xf32, #tpu.memory_space<vmem>>, vector<16x128xf32>
      %c0_11 = arith.constant 0 : index
      %c0_12 = arith.constant 0 : index
      %13 = vector.load %arg5[%c0_11, %c0_12] : memref<16x128xf32, #tpu.memory_space<vmem>>, vector<16x128xf32>
      %c0_13 = arith.constant 0 : index
      %c0_14 = arith.constant 0 : index
      %14 = vector.load %arg9[%c0_13, %c0_14] : memref<16x1024xf32, #tpu.memory_space<vmem>>, vector<16x128xf32>
      %15 = vector.extract_strided_slice %14 {offsets = [0, 64], sizes = [16, 64], strides = [1, 1]} : vector<16x128xf32> to vector<16x64xf32>
      %16 = vector.extract_strided_slice %14 {offsets = [0, 0], sizes = [16, 64], strides = [1, 1]} : vector<16x128xf32> to vector<16x64xf32>
      %17 = tpu.concatenate %15, %16 in 1 : vector<16x64xf32>, vector<16x64xf32> -> vector<16x128xf32>
      %18 = arith.mulf %14, %12 : vector<16x128xf32>
      %19 = arith.mulf %17, %13 : vector<16x128xf32>
      %20 = arith.addf %18, %19 : vector<16x128xf32>
      %cst_15 = arith.constant 0.0883883461 : f32
      %21 = vector.broadcast %cst_15 : f32 to vector<16x128xf32>
      %22 = arith.mulf %20, %21 : vector<16x128xf32>
      %23 = arith.truncf %22 : vector<16x128xf32> to vector<16x128xbf16>
      %c0_16 = arith.constant 0 : index
      %c0_17 = arith.constant 0 : index
      %24 = vector.load %arg6[%c0_16, %c0_17] : memref<16x512xbf16, #tpu.memory_space<vmem>>, vector<16x128xbf16>
      tpu.vector_store %arg6[%c0_16, %c0_17], %23 {strides = array<i32>} : memref<16x512xbf16, #tpu.memory_space<vmem>>, vector<16x128xbf16>,
      %c0_18 = arith.constant 0 : index
      %c128 = arith.constant 128 : index
      %25 = vector.load %arg9[%c0_18, %c128] : memref<16x1024xf32, #tpu.memory_space<vmem>>, vector<16x128xf32>
      %26 = vector.extract_strided_slice %25 {offsets = [0, 64], sizes = [16, 64], strides = [1, 1]} : vector<16x128xf32> to vector<16x64xf32>
      %27 = vector.extract_strided_slice %25 {offsets = [0, 0], sizes = [16, 64], strides = [1, 1]} : vector<16x128xf32> to vector<16x64xf32>
      %28 = tpu.concatenate %26, %27 in 1 : vector<16x64xf32>, vector<16x64xf32> -> vector<16x128xf32>
      %29 = arith.mulf %25, %12 : vector<16x128xf32>
      %30 = arith.mulf %28, %13 : vector<16x128xf32>
      %31 = arith.addf %29, %30 : vector<16x128xf32>
      %cst_19 = arith.constant 0.0883883461 : f32
      %32 = vector.broadcast %cst_19 : f32 to vector<16x128xf32>
      %33 = arith.mulf %31, %32 : vector<16x128xf32>
      %34 = arith.truncf %33 : vector<16x128xf32> to vector<16x128xbf16>
      %c0_20 = arith.constant 0 : index
      %c128_21 = arith.constant 128 : index
      %35 = vector.load %arg6[%c0_20, %c128_21] : memref<16x512xbf16, #tpu.memory_space<vmem>>, vector<16x128xbf16>
      tpu.vector_store %arg6[%c0_20, %c128_21], %34 {strides = array<i32>} : memref<16x512xbf16, #tpu.memory_space<vmem>>, vector<16x128xbf16>,
      %c0_22 = arith.constant 0 : index
      %c256 = arith.constant 256 : index
      %36 = vector.load %arg9[%c0_22, %c256] : memref<16x1024xf32, #tpu.memory_space<vmem>>, vector<16x128xf32>
      %37 = vector.extract_strided_slice %36 {offsets = [0, 64], sizes = [16, 64], strides = [1, 1]} : vector<16x128xf32> to vector<16x64xf32>
      %38 = vector.extract_strided_slice %36 {offsets = [0, 0], sizes = [16, 64], strides = [1, 1]} : vector<16x128xf32> to vector<16x64xf32>
      %39 = tpu.concatenate %37, %38 in 1 : vector<16x64xf32>, vector<16x64xf32> -> vector<16x128xf32>
      %40 = arith.mulf %36, %12 : vector<16x128xf32>
      %41 = arith.mulf %39, %13 : vector<16x128xf32>
      %42 = arith.addf %40, %41 : vector<16x128xf32>
      %cst_23 = arith.constant 0.0883883461 : f32
      %43 = vector.broadcast %cst_23 : f32 to vector<16x128xf32>
      %44 = arith.mulf %42, %43 : vector<16x128xf32>
      %45 = arith.truncf %44 : vector<16x128xf32> to vector<16x128xbf16>
      %c0_24 = arith.constant 0 : index
      %c256_25 = arith.constant 256 : index
      %46 = vector.load %arg6[%c0_24, %c256_25] : memref<16x512xbf16, #tpu.memory_space<vmem>>, vector<16x128xbf16>
      tpu.vector_store %arg6[%c0_24, %c256_25], %45 {strides = array<i32>} : memref<16x512xbf16, #tpu.memory_space<vmem>>, vector<16x128xbf16>,
      %c0_26 = arith.constant 0 : index
      %c384 = arith.constant 384 : index
      %47 = vector.load %arg9[%c0_26, %c384] : memref<16x1024xf32, #tpu.memory_space<vmem>>, vector<16x128xf32>
      %48 = vector.extract_strided_slice %47 {offsets = [0, 64], sizes = [16, 64], strides = [1, 1]} : vector<16x128xf32> to vector<16x64xf32>
      %49 = vector.extract_strided_slice %47 {offsets = [0, 0], sizes = [16, 64], strides = [1, 1]} : vector<16x128xf32> to vector<16x64xf32>
      %50 = tpu.concatenate %48, %49 in 1 : vector<16x64xf32>, vector<16x64xf32> -> vector<16x128xf32>
      %51 = arith.mulf %47, %12 : vector<16x128xf32>
      %52 = arith.mulf %50, %13 : vector<16x128xf32>
      %53 = arith.addf %51, %52 : vector<16x128xf32>
      %cst_27 = arith.constant 0.0883883461 : f32
      %54 = vector.broadcast %cst_27 : f32 to vector<16x128xf32>
      %55 = arith.mulf %53, %54 : vector<16x128xf32>
      %56 = arith.truncf %55 : vector<16x128xf32> to vector<16x128xbf16>
      %c0_28 = arith.constant 0 : index
      %c384_29 = arith.constant 384 : index
      %57 = vector.load %arg6[%c0_28, %c384_29] : memref<16x512xbf16, #tpu.memory_space<vmem>>, vector<16x128xbf16>
      tpu.vector_store %arg6[%c0_28, %c384_29], %56 {strides = array<i32>} : memref<16x512xbf16, #tpu.memory_space<vmem>>, vector<16x128xbf16>,
      %c0_30 = arith.constant 0 : index
      %c512 = arith.constant 512 : index
      %58 = vector.load %arg9[%c0_30, %c512] : memref<16x1024xf32, #tpu.memory_space<vmem>>, vector<16x128xf32>
      %59 = vector.extract_strided_slice %58 {offsets = [0, 64], sizes = [16, 64], strides = [1, 1]} : vector<16x128xf32> to vector<16x64xf32>
      %60 = vector.extract_strided_slice %58 {offsets = [0, 0], sizes = [16, 64], strides = [1, 1]} : vector<16x128xf32> to vector<16x64xf32>
      %61 = tpu.concatenate %59, %60 in 1 : vector<16x64xf32>, vector<16x64xf32> -> vector<16x128xf32>
      %62 = arith.mulf %58, %12 : vector<16x128xf32>
      %63 = arith.mulf %61, %13 : vector<16x128xf32>
      %64 = arith.addf %62, %63 : vector<16x128xf32>
      %65 = arith.truncf %64 : vector<16x128xf32> to vector<16x128xbf16>
      %c0_31 = arith.constant 0 : index
      %c0_32 = arith.constant 0 : index
      %66 = vector.load %arg7[%c0_31, %c0_32] : memref<16x256xbf16, #tpu.memory_space<vmem>>, vector<16x128xbf16>
      tpu.vector_store %arg7[%c0_31, %c0_32], %65 {strides = array<i32>} : memref<16x256xbf16, #tpu.memory_space<vmem>>, vector<16x128xbf16>,
      %c0_33 = arith.constant 0 : index
      %c640 = arith.constant 640 : index
      %67 = vector.load %arg9[%c0_33, %c640] : memref<16x1024xf32, #tpu.memory_space<vmem>>, vector<16x128xf32>
      %68 = vector.extract_strided_slice %67 {offsets = [0, 64], sizes = [16, 64], strides = [1, 1]} : vector<16x128xf32> to vector<16x64xf32>
      %69 = vector.extract_strided_slice %67 {offsets = [0, 0], sizes = [16, 64], strides = [1, 1]} : vector<16x128xf32> to vector<16x64xf32>
      %70 = tpu.concatenate %68, %69 in 1 : vector<16x64xf32>, vector<16x64xf32> -> vector<16x128xf32>
      %71 = arith.mulf %67, %12 : vector<16x128xf32>
      %72 = arith.mulf %70, %13 : vector<16x128xf32>
      %73 = arith.addf %71, %72 : vector<16x128xf32>
      %74 = arith.truncf %73 : vector<16x128xf32> to vector<16x128xbf16>
      %c0_34 = arith.constant 0 : index
      %c128_35 = arith.constant 128 : index
      %75 = vector.load %arg7[%c0_34, %c128_35] : memref<16x256xbf16, #tpu.memory_space<vmem>>, vector<16x128xbf16>
      tpu.vector_store %arg7[%c0_34, %c128_35], %74 {strides = array<i32>} : memref<16x256xbf16, #tpu.memory_space<vmem>>, vector<16x128xbf16>,
      %c0_36 = arith.constant 0 : index
      %c768 = arith.constant 768 : index
      %76 = vector.load %arg9[%c0_36, %c768] : memref<16x1024xf32, #tpu.memory_space<vmem>>, vector<16x256xf32>
      %77 = arith.truncf %76 : vector<16x256xf32> to vector<16x256xbf16>
      %c0_37 = arith.constant 0 : index
      %c0_38 = arith.constant 0 : index
      %78 = vector.load %arg8[%c0_37, %c0_38] : memref<16x256xbf16, #tpu.memory_space<vmem>>, vector<16x256xbf16>
      tpu.vector_store %arg8[%c0_37, %c0_38], %77 {strides = array<i32>} : memref<16x256xbf16, #tpu.memory_space<vmem>>, vector<16x256xbf16>,
    } else {
    }
    return
  }
  func.func @transform_0(%arg0: i32, %arg1: i32) -> (i32, i32) {
    %c0_i32 = arith.constant 0 : i32
    return %arg0, %arg1 : i32, i32
  }
  func.func @transform_1(%arg0: i32, %arg1: i32) -> (i32, i32) {
    %c0_i32 = arith.constant 0 : i32
    %c0_i32_0 = arith.constant 0 : i32
    return %arg1, %c0_i32 : i32, i32
  }
  func.func @transform_2(%arg0: i32, %arg1: i32) -> (i32, i32) {
    %c0_i32 = arith.constant 0 : i32
    %c0_i32_0 = arith.constant 0 : i32
    return %arg0, %c0_i32 : i32, i32
  }
  func.func @transform_3(%arg0: i32, %arg1: i32) -> (i32, i32) {
    %c0_i32 = arith.constant 0 : i32
    %c0_i32_0 = arith.constant 0 : i32
    return %arg0, %c0_i32 : i32, i32
  }
  func.func @transform_4(%arg0: i32, %arg1: i32) -> (i32, i32) {
    %c0_i32 = arith.constant 0 : i32
    %c0_i32_0 = arith.constant 0 : i32
    return %arg0, %c0_i32 : i32, i32
  }
  func.func @transform_5(%arg0: i32, %arg1: i32) -> (i32, i32) {
    %c0_i32 = arith.constant 0 : i32
    %c0_i32_0 = arith.constant 0 : i32
    return %arg0, %c0_i32 : i32, i32
  }
  func.func @transform_6(%arg0: i32, %arg1: i32) -> (i32, i32) {
    %c0_i32 = arith.constant 0 : i32
    %c0_i32_0 = arith.constant 0 : i32
    return %arg0, %c0_i32 : i32, i32
  }
}

</mosaic_0001>

<llo_original>
// kernel: tpu_custom_call.1
$region0: #{tpu_custom_call.1}
  #allocation0 [shape = 'u32[]', space=smem, size = 0x4, offset = 0x4, fixed_abs, tag = 'smem constant byte address 0x4 - core index']
  #allocation1 [shape = 'u32[144,128]{1,0:T(1,128)}', space=vmem, size = 0x12000, scoped, tag = 'internal scratch']
  #allocation2 [shape = 'f32[16,1024]{1,0:T(8,128)}', space=vmem, size = 0x10000, scoped, tag = 'scratch operand']
  %s0 = inlined_call_operand.hbm [shape: bf16[16,512], index: 0, kind: input, shape index: {}]
  %s1 = inlined_call_operand.hbm [shape: bf16[512,1024], index: 1, kind: input, shape index: {}]
  %s2 = inlined_call_operand.hbm [shape: f32[16,128], index: 2, kind: input, shape index: {}]
  %s3 = inlined_call_operand.hbm [shape: f32[16,128], index: 3, kind: input, shape index: {}]
  %s4 = inlined_call_operand.hbm [shape: bf16[16,512], index: 4, kind: output, shape index: {0}]
  %s5 = inlined_call_operand.hbm [shape: bf16[16,256], index: 5, kind: output, shape index: {1}]
  %s6 = inlined_call_operand.hbm [shape: bf16[16,256], index: 6, kind: output, shape index: {2}]
  %7 = xla_tuple %s4, %s5, %s6
  %s8 = sld [smem:[#allocation0]]
  $region89: #{tpu_custom_call.1} parent=0
    _
  %s10 = ssub.s32 1, %s8
  %s11 = scalar_select 0, %s10, %s8
  $region1: #{tpu_custom_call.1} parent=0
    #allocation3 [shape = 'u8[16384]{0}', space=vmem, size = 0x4000, scoped, tag = 'input window, operand 0']
    #allocation4 [shape = 's32[2]{0}', space=sflag, size = 0x8, scoped, tag = 'scoped memory for tpu_custom_call.1']
    #allocation5 [shape = 's32[2]{0}', space=sflag, size = 0x8, scoped, tag = 'scoped memory for tpu_custom_call.1']
    #allocation6 [shape = 'u8[1048576]{0}', space=vmem, size = 0x100000, scoped, tag = 'input window, operand 1']
    #allocation7 [shape = 's32[2]{0}', space=sflag, size = 0x8, scoped, tag = 'scoped memory for tpu_custom_call.1']
    #allocation8 [shape = 'u8[8192]{0}', space=vmem, size = 0x2000, scoped, tag = 'input window, operand 2, single buffered']
    #allocation9 [shape = 'u8[8192]{0}', space=vmem, size = 0x2000, scoped, tag = 'input window, operand 3, single buffered']
    #allocation10 [shape = 's32[1]{0}', space=sflag, size = 0x4, scoped, tag = 'scoped memory for tpu_custom_call.1']
    #allocation11 [shape = 'u8[16384]{0}', space=vmem, size = 0x4000, scoped, tag = 'output window, operand 0, single buffered']
    #allocation12 [shape = 'u8[8192]{0}', space=vmem, size = 0x2000, scoped, tag = 'output window, operand 1, single buffered']
    #allocation13 [shape = 's32[1]{0}', space=sflag, size = 0x4, scoped, tag = 'scoped memory for tpu_custom_call.1']
    #allocation14 [shape = 'u8[8192]{0}', space=vmem, size = 0x2000, scoped, tag = 'output window, operand 2, single buffered']
    %12 = vsyncpa [#allocation4], 0
    %s13 = scalar_lea.sflag [#allocation4], 1
    %14 = vsyncpa %s13, 0
    %15 = vsyncpa [#allocation7], 0
    %s16 = scalar_lea.sflag [#allocation7], 1
    %17 = vsyncpa %s16, 0
    %18 = vsyncpa [#allocation10], 0
    %19 = vsyncpa [#allocation5], 0
    %20 = vsyncpa [#allocation13], 0
    loop: start=0, step=1, limit=4
    $region2: #{tpu_custom_call.1} parent=1 // loop_pre_header
      _
    $region3: #{tpu_custom_call.1} parent=1 // loop_header
      %s22 = sphi 0, %s26
      %p23 = scmp.ge.s32.totalorder %s22, 4
      %s29 = sphi 0, %s41
      %s30 = sphi 0, %s37
      %s31 = sphi 0, %s29
      %s32 = sphi 0, %s30
      %s33 = sphi 0, %s31
      %s34 = sphi 0, %s32
      %s46 = sphi 0, %s48
      %s49 = sphi 0, %s46
      %s50 = sphi 0, %s49
      %s66 = sphi 0, %s50
      %s72 = sphi 0, %s74
      %s75 = sphi 0, %s72
      %s76 = sphi 0, %s75
      %s92 = sphi 0, %s76
      %s98 = sphi 0, %s100
      %s101 = sphi 0, %s98
      %s102 = sphi 0, %s101
      %s118 = sphi 0, %s102
      %s124 = sphi 0, %s126
      %s127 = sphi 0, %s124
      %s128 = sphi 0, %s127
      %s144 = sphi 0, %s128
      %s150 = sphi 0, %s152
      %s153 = sphi 0, %s150
      %s154 = sphi 0, %s153
      %s170 = sphi 0, %s154
      %s176 = sphi 0, %s178
      %s179 = sphi 0, %s176
      %s180 = sphi 0, %s179
      %s196 = sphi 0, %s180
      %s202 = sphi 0, %s204
      %s205 = sphi 0, %s202
      %s206 = sphi 0, %s205
      %s222 = sphi 0, %s206
    $region4: #{tpu_custom_call.1} parent=1 // loop_header_branch
      %25 = sbr.rel (%p23) target = $region8
    $region5: #{tpu_custom_call.1} parent=1 // loop_body
      %s27 = ssub.s32 %s22, 1
      %s28 = ssub.s32 %s22, 2
      %s35 = sadd.s32 1, %s30
      %p36 = scmp.ge.s32.totalorder %s35, 2
      %s37 = scalar_select %p36, 0, %s35
      %s38 = sadd.s32 1, %s29
      %s39 = scalar_select %p36, %s38, %s29
      %p40 = scmp.ge.s32.totalorder %s39, 1
      %s41 = scalar_select %p40, 0, %s39
      %s42 = ssub.s32 %s29, %s41
      %s43 = ssub.s32 %s30, %s37
      %s44 = sor.u32 %s42, %s43
      %p45 = scmp.eq.s32.totalorder %s44, 0
      %s47 = sadd.s32 %s46, 1
      %s48 = scalar_select %p45, %s46, %s47
      %p51 = pneg %p45
      %p52 = scmp.eq.s32.totalorder %s22, 1
      %p53 = por %p51, %p52
      %p54 = scmp.ne.s32.totalorder %s46, %s49
      %p55 = scmp.eq.s32.totalorder %s22, 0
      %p56 = por %p54, %p55
      %p57 = scmp.ne.s32.totalorder %s46, %s49
      %p58 = scmp.eq.s32.totalorder %s27, 1
      %p59 = por %p57, %p58
      %p60 = scmp.ne.s32.totalorder %s49, %s50
      %p61 = scmp.eq.s32.totalorder %s27, 0
      %p62 = por %p60, %p61
      %p63 = scmp.ne.s32.totalorder %s49, %s50
      %p64 = scmp.eq.s32.totalorder %s28, 1
      %p65 = por %p63, %p64
      %p67 = scmp.ne.s32.totalorder %s50, %s66
      %p68 = scmp.eq.s32.totalorder %s28, 0
      %p69 = por %p67, %p68
      %s70 = ssub.s32 %s30, %s37
      %p71 = scmp.eq.s32.totalorder %s70, 0
      %s73 = sadd.s32 %s72, 1
      %s74 = scalar_select %p71, %s72, %s73
      %p77 = pneg %p71
      %p78 = scmp.eq.s32.totalorder %s22, 1
      %p79 = por %p77, %p78
      %p80 = scmp.ne.s32.totalorder %s72, %s75
      %p81 = scmp.eq.s32.totalorder %s22, 0
      %p82 = por %p80, %p81
      %p83 = scmp.ne.s32.totalorder %s72, %s75
      %p84 = scmp.eq.s32.totalorder %s27, 1
      %p85 = por %p83, %p84
      %p86 = scmp.ne.s32.totalorder %s75, %s76
      %p87 = scmp.eq.s32.totalorder %s27, 0
      %p88 = por %p86, %p87
      %p89 = scmp.ne.s32.totalorder %s75, %s76
      %p90 = scmp.eq.s32.totalorder %s28, 1
      %p91 = por %p89, %p90
      %p93 = scmp.ne.s32.totalorder %s76, %s92
      %p94 = scmp.eq.s32.totalorder %s28, 0
      %p95 = por %p93, %p94
      %s96 = ssub.s32 %s29, %s41
      %p97 = scmp.eq.s32.totalorder %s96, 0
      %s99 = sadd.s32 %s98, 1
      %s100 = scalar_select %p97, %s98, %s99
      %p103 = pneg %p97
      %p104 = scmp.eq.s32.totalorder %s22, 1
      %p105 = por %p103, %p104
      %p106 = scmp.ne.s32.totalorder %s98, %s101
      %p107 = scmp.eq.s32.totalorder %s22, 0
      %p108 = por %p106, %p107
      %p109 = scmp.ne.s32.totalorder %s98, %s101
      %p110 = scmp.eq.s32.totalorder %s27, 1
      %p111 = por %p109, %p110
      %p112 = scmp.ne.s32.totalorder %s101, %s102
      %p113 = scmp.eq.s32.totalorder %s27, 0
      %p114 = por %p112, %p113
      %p115 = scmp.ne.s32.totalorder %s101, %s102
      %p116 = scmp.eq.s32.totalorder %s28, 1
      %p117 = por %p115, %p116
      %p119 = scmp.ne.s32.totalorder %s102, %s118
      %p120 = scmp.eq.s32.totalorder %s28, 0
      %p121 = por %p119, %p120
      %s122 = ssub.s32 %s29, %s41
      %p123 = scmp.eq.s32.totalorder %s122, 0
      %s125 = sadd.s32 %s124, 1
      %s126 = scalar_select %p123, %s124, %s125
      %p129 = pneg %p123
      %p130 = scmp.eq.s32.totalorder %s22, 1
      %p131 = por %p129, %p130
      %p132 = scmp.ne.s32.totalorder %s124, %s127
      %p133 = scmp.eq.s32.totalorder %s22, 0
      %p134 = por %p132, %p133
      %p135 = scmp.ne.s32.totalorder %s124, %s127
      %p136 = scmp.eq.s32.totalorder %s27, 1
      %p137 = por %p135, %p136
      %p138 = scmp.ne.s32.totalorder %s127, %s128
      %p139 = scmp.eq.s32.totalorder %s27, 0
      %p140 = por %p138, %p139
      %p141 = scmp.ne.s32.totalorder %s127, %s128
      %p142 = scmp.eq.s32.totalorder %s28, 1
      %p143 = por %p141, %p142
      %p145 = scmp.ne.s32.totalorder %s128, %s144
      %p146 = scmp.eq.s32.totalorder %s28, 0
      %p147 = por %p145, %p146
      %s148 = ssub.s32 %s29, %s41
      %p149 = scmp.eq.s32.totalorder %s148, 0
      %s151 = sadd.s32 %s150, 1
      %s152 = scalar_select %p149, %s150, %s151
      %p155 = pneg %p149
      %p156 = scmp.eq.s32.totalorder %s22, 1
      %p157 = por %p155, %p156
      %p158 = scmp.ne.s32.totalorder %s150, %s153
      %p159 = scmp.eq.s32.totalorder %s22, 0
      %p160 = por %p158, %p159
      %p161 = scmp.ne.s32.totalorder %s150, %s153
      %p162 = scmp.eq.s32.totalorder %s27, 1
      %p163 = por %p161, %p162
      %p164 = scmp.ne.s32.totalorder %s153, %s154
      %p165 = scmp.eq.s32.totalorder %s27, 0
      %p166 = por %p164, %p165
      %p167 = scmp.ne.s32.totalorder %s153, %s154
      %p168 = scmp.eq.s32.totalorder %s28, 1
      %p169 = por %p167, %p168
      %p171 = scmp.ne.s32.totalorder %s154, %s170
      %p172 = scmp.eq.s32.totalorder %s28, 0
      %p173 = por %p171, %p172
      %s174 = ssub.s32 %s29, %s41
      %p175 = scmp.eq.s32.totalorder %s174, 0
      %s177 = sadd.s32 %s176, 1
      %s178 = scalar_select %p175, %s176, %s177
      %p181 = pneg %p175
      %p182 = scmp.eq.s32.totalorder %s22, 1
      %p183 = por %p181, %p182
      %p184 = scmp.ne.s32.totalorder %s176, %s179
      %p185 = scmp.eq.s32.totalorder %s22, 0
      %p186 = por %p184, %p185
      %p187 = scmp.ne.s32.totalorder %s176, %s179
      %p188 = scmp.eq.s32.totalorder %s27, 1
      %p189 = por %p187, %p188
      %p190 = scmp.ne.s32.totalorder %s179, %s180
      %p191 = scmp.eq.s32.totalorder %s27, 0
      %p192 = por %p190, %p191
      %p193 = scmp.ne.s32.totalorder %s179, %s180
      %p194 = scmp.eq.s32.totalorder %s28, 1
      %p195 = por %p193, %p194
      %p197 = scmp.ne.s32.totalorder %s180, %s196
      %p198 = scmp.eq.s32.totalorder %s28, 0
      %p199 = por %p197, %p198
      %s200 = ssub.s32 %s29, %s41
      %p201 = scmp.eq.s32.totalorder %s200, 0
      %s203 = sadd.s32 %s202, 1
      %s204 = scalar_select %p201, %s202, %s203
      %p207 = pneg %p201
      %p208 = scmp.eq.s32.totalorder %s22, 1
      %p209 = por %p207, %p208
      %p210 = scmp.ne.s32.totalorder %s202, %s205
      %p211 = scmp.eq.s32.totalorder %s22, 0
      %p212 = por %p210, %p211
      %p213 = scmp.ne.s32.totalorder %s202, %s205
      %p214 = scmp.eq.s32.totalorder %s27, 1
      %p215 = por %p213, %p214
      %p216 = scmp.ne.s32.totalorder %s205, %s206
      %p217 = scmp.eq.s32.totalorder %s27, 0
      %p218 = por %p216, %p217
      %p219 = scmp.ne.s32.totalorder %s205, %s206
      %p220 = scmp.eq.s32.totalorder %s28, 1
      %p221 = por %p219, %p220
      %p223 = scmp.ne.s32.totalorder %s206, %s222
      %p224 = scmp.eq.s32.totalorder %s28, 0
      %p225 = por %p223, %p224
      %p226 = scmp.le.s32.totalorder 1, %s22
      %p227 = scmp.lt.s32.totalorder %s22, 3
      %p228 = pnand %p226, %p227
      %p229 = pneg %p228
      // Predicated region
      $region9: #{tpu_custom_call.1} parent=5 // pred_check
        _
      $region10: #{tpu_custom_call.1} parent=5 // pred_check_branch
        %231 = sbr.rel (%p228) target = $region12
      $region11: #{tpu_custom_call.1} parent=5 // pred_region
        %s232 = ssub.s32 %s22, 1
        // Predicated region
        $region13: #{tpu_custom_call.1} parent=11 // pred_check
          %p233 = pneg %p114
        $region14: #{tpu_custom_call.1} parent=11 // pred_check_branch
          %235 = sbr.rel (%p233) target = $region16
        $region15: #{tpu_custom_call.1} parent=11 // pred_region
          %s236 = smul.u32 2, %s31
          %s238 = ssub.s32 256, 256
          %239 = vsyncadd [#allocation7], %s238
          %s240 = smul.addr %s236, 128
          %s241 = scalar_lea.hbm %s2, %s240
          %s242 = sshll.u32 [#allocation8], 4
          %s243 = int_to_ptr.vmem [resolvable:$true] %s242
          %248 = dma.hbm_to_vmem [thread:$0]  %s241, 256, %s243, [#allocation7], 128, 128, 8
        $region16: #{tpu_custom_call.1} parent=11 // pred_fallthru
          _
        // Predicated region
        $region17: #{tpu_custom_call.1} parent=11 // pred_check
          %p249 = pneg %p140
        $region18: #{tpu_custom_call.1} parent=11 // pred_check_branch
          %251 = sbr.rel (%p249) target = $region20
        $region19: #{tpu_custom_call.1} parent=11 // pred_region
          %s252 = smul.u32 2, %s31
          %s254 = ssub.s32 256, 256
          %255 = vsyncadd [#allocation10], %s254
          %s256 = smul.addr %s252, 128
          %s257 = scalar_lea.hbm %s3, %s256
          %s258 = sshll.u32 [#allocation9], 4
          %s259 = int_to_ptr.vmem [resolvable:$true] %s258
          %264 = dma.hbm_to_vmem [thread:$0]  %s257, 256, %s259, [#allocation10], 128, 128, 8
        $region20: #{tpu_custom_call.1} parent=11 // pred_fallthru
          _
      $region12: #{tpu_custom_call.1} parent=5 // pred_fallthru
        _
      %p265 = scmp.lt.s32.totalorder %s22, 2
      // Predicated region
      $region21: #{tpu_custom_call.1} parent=5 // pred_check
        %p266 = pneg %p265
      $region22: #{tpu_custom_call.1} parent=5 // pred_check_branch
        %268 = sbr.rel (%p266) target = $region24
      $region23: #{tpu_custom_call.1} parent=5 // pred_region
        // Predicated region
        $region25: #{tpu_custom_call.1} parent=23 // pred_check
          %p269 = pneg %p56
        $region26: #{tpu_custom_call.1} parent=23 // pred_check_branch
          %271 = sbr.rel (%p269) target = $region28
        $region27: #{tpu_custom_call.1} parent=23 // pred_region
          %s272 = sand.u32 %s46, 1
          %s273 = scalar_lea.sflag [#allocation4], %s272
          %s274 = sand.u32 %s46, 1
          %s275 = smul.addr %s274, 16
          %s276 = scalar_lea.vmem [#allocation3], %s275
          %s277 = smul.u32 2, %s29
          %s278 = smul.u32 2, %s30
          %s280 = ssub.s32 256, 256
          %281 = vsyncadd %s273, %s280
          %s282 = smul.addr %s277, 4
          %s283 = sadd.s32 %s278, %s282
          %s284 = smul.addr %s283, 64
          %s285 = scalar_lea.hbm %s0, %s284
          %s286 = sshll.u32 %s276, 4
          %s287 = int_to_ptr.vmem [resolvable:$true] %s286
          %292 = dma.hbm_to_vmem [thread:$0]  %s285, 256, %s287, %s273, 256, 128, 8
        $region28: #{tpu_custom_call.1} parent=23 // pred_fallthru
          _
        // Predicated region
        $region29: #{tpu_custom_call.1} parent=23 // pred_check
          %p293 = pneg %p82
        $region30: #{tpu_custom_call.1} parent=23 // pred_check_branch
          %295 = sbr.rel (%p293) target = $region32
        $region31: #{tpu_custom_call.1} parent=23 // pred_region
          %s296 = sand.u32 %s22, 1
          %s297 = scalar_lea.sflag [#allocation7], %s296
          %s298 = sand.u32 %s72, 1
          %s299 = smul.addr %s298, 1024
          %s300 = scalar_lea.vmem [#allocation6], %s299
          %s301 = smul.u32 32, %s30
          %s303 = ssub.s32 16384, 16384
          %304 = vsyncadd %s297, %s303
          %s305 = smul.addr %s301, 8
          %s306 = smul.addr %s305, 64
          %s307 = scalar_lea.hbm %s1, %s306
          %s308 = sshll.u32 %s300, 4
          %s309 = int_to_ptr.vmem [resolvable:$true] %s308
          %314 = dma.hbm_to_vmem [thread:$0]  %s307, 16384, %s309, %s297, 512, 512, 32
        $region32: #{tpu_custom_call.1} parent=23 // pred_fallthru
          _
      $region24: #{tpu_custom_call.1} parent=5 // pred_fallthru
        _
      %p315 = scmp.le.s32.totalorder 1, %s22
      %p316 = scmp.lt.s32.totalorder %s22, 3
      %p317 = pnand %p315, %p316
      %p318 = pneg %p317
      // Predicated region
      $region33: #{tpu_custom_call.1} parent=5 // pred_check
        _
      $region34: #{tpu_custom_call.1} parent=5 // pred_check_branch
        %320 = sbr.rel (%p317) target = $region36
      $region35: #{tpu_custom_call.1} parent=5 // pred_region
        %s321 = ssub.s32 %s22, 1
        %s322 = sand.u32 %s49, 1
        %s323 = scalar_lea.sflag [#allocation4], %s322
        %s324 = sand.u32 %s49, 1
        %s325 = smul.addr %s324, 16
        %s326 = scalar_lea.vmem [#allocation3], %s325
        // Predicated region
        $region37: #{tpu_custom_call.1} parent=35 // pred_check
          %p327 = pneg %p62
        $region38: #{tpu_custom_call.1} parent=35 // pred_check_branch
          %329 = sbr.rel (%p327) target = $region40
        $region39: #{tpu_custom_call.1} parent=35 // pred_region
          %330 = dma.done %s323, 256
        $region40: #{tpu_custom_call.1} parent=35 // pred_fallthru
          _
        %s331 = sand.u32 %s27, 1
        %s332 = scalar_lea.sflag [#allocation7], %s331
        %s333 = sand.u32 %s75, 1
        %s334 = smul.addr %s333, 1024
        %s335 = scalar_lea.vmem [#allocation6], %s334
        // Predicated region
        $region41: #{tpu_custom_call.1} parent=35 // pred_check
          %p336 = pneg %p88
        $region42: #{tpu_custom_call.1} parent=35 // pred_check_branch
          %338 = sbr.rel (%p336) target = $region44
        $region43: #{tpu_custom_call.1} parent=35 // pred_region
          %339 = dma.done %s332, 16384
        $region44: #{tpu_custom_call.1} parent=35 // pred_fallthru
          _
        // Predicated region
        $region45: #{tpu_custom_call.1} parent=35 // pred_check
          %p340 = pneg %p114
        $region46: #{tpu_custom_call.1} parent=35 // pred_check_branch
          %342 = sbr.rel (%p340) target = $region48
        $region47: #{tpu_custom_call.1} parent=35 // pred_region
          %343 = dma.done [#allocation7], 256
        $region48: #{tpu_custom_call.1} parent=35 // pred_fallthru
          _
        // Predicated region
        $region49: #{tpu_custom_call.1} parent=35 // pred_check
          %p344 = pneg %p140
        $region50: #{tpu_custom_call.1} parent=35 // pred_check_branch
          %346 = sbr.rel (%p344) target = $region52
        $region51: #{tpu_custom_call.1} parent=35 // pred_region
          %347 = dma.done [#allocation10], 256
        $region52: #{tpu_custom_call.1} parent=35 // pred_fallthru
          _
        %s348 = sand.u32 %s49, 1
        %s349 = scalar_lea.sflag [#allocation4], %s348
        %s350 = sand.u32 %s49, 1
        %s351 = smul.addr %s350, 16
        %s352 = scalar_lea.vmem [#allocation3], %s351
        %p353 = pneg %p62
        %p354 = pneg %p59
        %s355 = sand.u32 %s27, 1
        %s356 = scalar_lea.sflag [#allocation7], %s355
        %s357 = sand.u32 %s75, 1
        %s358 = smul.addr %s357, 1024
        %s359 = scalar_lea.vmem [#allocation6], %s358
        %p360 = pneg %p88
        %p361 = pneg %p85
        %p362 = pneg %p114
        %p363 = pneg %p111
        %p364 = pneg %p140
        %p365 = pneg %p137
        %p366 = pneg %p166
        %p367 = pneg %p163
        %p368 = pneg %p192
        %p369 = pneg %p189
        %p370 = pneg %p218
        %p371 = pneg %p215
        %s372 = smul.u32 2, %s31
        %s373 = smul.u32 2, %s32
        %s374 = smul.u32 32, %s32
        %s375 = smul.u32 2, %s31
        %s376 = smul.u32 2, %s31
        %s377 = smul.u32 2, %s31
        %s378 = smul.u32 2, %s31
        %s379 = smul.u32 2, %s31
        %p380 = scmp.eq.s32.totalorder %s32, 0
        // Predicated region
        $region53: #{tpu_custom_call.1} parent=35 // pred_check
          %p381 = pneg %p380
        $region54: #{tpu_custom_call.1} parent=35 // pred_check_branch
          %383 = sbr.rel (%p381) target = $region56
        $region55: #{tpu_custom_call.1} parent=35 // pred_region
          %384 = vst [vmem:[#allocation2] sm:$0xff] 0.0
          %385 = vst [vmem:[#allocation2 + $0x8] sm:$0xff] 0.0
          %386 = vst [vmem:[#allocation2 + $0x10] sm:$0xff] 0.0
          %387 = vst [vmem:[#allocation2 + $0x18] sm:$0xff] 0.0
          %388 = vst [vmem:[#allocation2 + $0x20] sm:$0xff] 0.0
          %389 = vst [vmem:[#allocation2 + $0x28] sm:$0xff] 0.0
          %390 = vst [vmem:[#allocation2 + $0x30] sm:$0xff] 0.0
          %391 = vst [vmem:[#allocation2 + $0x38] sm:$0xff] 0.0
          %392 = vst [vmem:[#allocation2 + $0x40] sm:$0xff] 0.0
          %393 = vst [vmem:[#allocation2 + $0x48] sm:$0xff] 0.0
          %394 = vst [vmem:[#allocation2 + $0x50] sm:$0xff] 0.0
          %395 = vst [vmem:[#allocation2 + $0x58] sm:$0xff] 0.0
          %396 = vst [vmem:[#allocation2 + $0x60] sm:$0xff] 0.0
          %397 = vst [vmem:[#allocation2 + $0x68] sm:$0xff] 0.0
          %398 = vst [vmem:[#allocation2 + $0x70] sm:$0xff] 0.0
          %399 = vst [vmem:[#allocation2 + $0x78] sm:$0xff] 0.0
        $region56: #{tpu_custom_call.1} parent=35 // pred_fallthru
          _
        %v400 = vld [vmem:[#allocation2] sm:$0xff]
        %v401 = vld [vmem:[#allocation2 + $0x8] sm:$0xff]
        %v402 = vld [vmem:[#allocation2 + $0x10] sm:$0xff]
        %v403 = vld [vmem:[#allocation2 + $0x18] sm:$0xff]
        %v404 = vld [vmem:[#allocation2 + $0x20] sm:$0xff]
        %v405 = vld [vmem:[#allocation2 + $0x28] sm:$0xff]
        %v406 = vld [vmem:[#allocation2 + $0x30] sm:$0xff]
        %v407 = vld [vmem:[#allocation2 + $0x38] sm:$0xff]
        %v408 = vld [vmem:[#allocation2 + $0x40] sm:$0xff]
        %v409 = vld [vmem:[#allocation2 + $0x48] sm:$0xff]
        %v410 = vld [vmem:[#allocation2 + $0x50] sm:$0xff]
        %v411 = vld [vmem:[#allocation2 + $0x58] sm:$0xff]
        %v412 = vld [vmem:[#allocation2 + $0x60] sm:$0xff]
        %v413 = vld [vmem:[#allocation2 + $0x68] sm:$0xff]
        %v414 = vld [vmem:[#allocation2 + $0x70] sm:$0xff]
        %v415 = vld [vmem:[#allocation2 + $0x78] sm:$0xff]
        %v416 = vld [vmem:[%s326] sm:$0xff]
        %v417 = vld [vmem:[%s326 + $0x8] sm:$0xff]
        %v418 = vld [vmem:[%s335] sm:$0xff]
        %v419 = vld [vmem:[%s335 + $0x8] sm:$0xff]
        %v420 = vld [vmem:[%s335 + $0x10] sm:$0xff]
        %v421 = vld [vmem:[%s335 + $0x18] sm:$0xff]
        %v422 = vld [vmem:[%s335 + $0x20] sm:$0xff]
        %v423 = vld [vmem:[%s335 + $0x28] sm:$0xff]
        %v424 = vld [vmem:[%s335 + $0x30] sm:$0xff]
        %v425 = vld [vmem:[%s335 + $0x38] sm:$0xff]
        %v426 = vld [vmem:[%s335 + $0x40] sm:$0xff]
        %v427 = vld [vmem:[%s335 + $0x48] sm:$0xff]
        %v428 = vld [vmem:[%s335 + $0x50] sm:$0xff]
        %v429 = vld [vmem:[%s335 + $0x58] sm:$0xff]
        %v430 = vld [vmem:[%s335 + $0x60] sm:$0xff]
        %v431 = vld [vmem:[%s335 + $0x68] sm:$0xff]
        %v432 = vld [vmem:[%s335 + $0x70] sm:$0xff]
        %v433 = vld [vmem:[%s335 + $0x78] sm:$0xff]
        %v434 = vld [vmem:[%s335 + $0x80] sm:$0xff]
        %v435 = vld [vmem:[%s335 + $0x88] sm:$0xff]
        %v436 = vld [vmem:[%s335 + $0x90] sm:$0xff]
        %v437 = vld [vmem:[%s335 + $0x98] sm:$0xff]
        %v438 = vld [vmem:[%s335 + $0xa0] sm:$0xff]
        %v439 = vld [vmem:[%s335 + $0xa8] sm:$0xff]
        %v440 = vld [vmem:[%s335 + $0xb0] sm:$0xff]
        %v441 = vld [vmem:[%s335 + $0xb8] sm:$0xff]
        %v442 = vld [vmem:[%s335 + $0xc0] sm:$0xff]
        %v443 = vld [vmem:[%s335 + $0xc8] sm:$0xff]
        %v444 = vld [vmem:[%s335 + $0xd0] sm:$0xff]
        %v445 = vld [vmem:[%s335 + $0xd8] sm:$0xff]
        %v446 = vld [vmem:[%s335 + $0xe0] sm:$0xff]
        %v447 = vld [vmem:[%s335 + $0xe8] sm:$0xff]
        %v448 = vld [vmem:[%s335 + $0xf0] sm:$0xff]
        %v449 = vld [vmem:[%s335 + $0xf8] sm:$0xff]
        %v450 = vld [vmem:[%s335 + $0x100] sm:$0xff]
        %v451 = vld [vmem:[%s335 + $0x108] sm:$0xff]
        %v452 = vld [vmem:[%s335 + $0x110] sm:$0xff]
        %v453 = vld [vmem:[%s335 + $0x118] sm:$0xff]
        %v454 = vld [vmem:[%s335 + $0x120] sm:$0xff]
        %v455 = vld [vmem:[%s335 + $0x128] sm:$0xff]
        %v456 = vld [vmem:[%s335 + $0x130] sm:$0xff]
        %v457 = vld [vmem:[%s335 + $0x138] sm:$0xff]
        %v458 = vld [vmem:[%s335 + $0x140] sm:$0xff]
        %v459 = vld [vmem:[%s335 + $0x148] sm:$0xff]
        %v460 = vld [vmem:[%s335 + $0x150] sm:$0xff]
        %v461 = vld [vmem:[%s335 + $0x158] sm:$0xff]
        %v462 = vld [vmem:[%s335 + $0x160] sm:$0xff]
        %v463 = vld [vmem:[%s335 + $0x168] sm:$0xff]
        %v464 = vld [vmem:[%s335 + $0x170] sm:$0xff]
        %v465 = vld [vmem:[%s335 + $0x178] sm:$0xff]
        %v466 = vld [vmem:[%s335 + $0x180] sm:$0xff]
        %v467 = vld [vmem:[%s335 + $0x188] sm:$0xff]
        %v468 = vld [vmem:[%s335 + $0x190] sm:$0xff]
        %v469 = vld [vmem:[%s335 + $0x198] sm:$0xff]
        %v470 = vld [vmem:[%s335 + $0x1a0] sm:$0xff]
        %v471 = vld [vmem:[%s335 + $0x1a8] sm:$0xff]
        %v472 = vld [vmem:[%s335 + $0x1b0] sm:$0xff]
        %v473 = vld [vmem:[%s335 + $0x1b8] sm:$0xff]
        %v474 = vld [vmem:[%s335 + $0x1c0] sm:$0xff]
        %v475 = vld [vmem:[%s335 + $0x1c8] sm:$0xff]
        %v476 = vld [vmem:[%s335 + $0x1d0] sm:$0xff]
        %v477 = vld [vmem:[%s335 + $0x1d8] sm:$0xff]
        %v478 = vld [vmem:[%s335 + $0x1e0] sm:$0xff]
        %v479 = vld [vmem:[%s335 + $0x1e8] sm:$0xff]
        %v480 = vld [vmem:[%s335 + $0x1f0] sm:$0xff]
        %v481 = vld [vmem:[%s335 + $0x1f8] sm:$0xff]
        %v482 = vld [vmem:[%s335 + $0x200] sm:$0xff]
        %v483 = vld [vmem:[%s335 + $0x208] sm:$0xff]
        %v484 = vld [vmem:[%s335 + $0x210] sm:$0xff]
        %v485 = vld [vmem:[%s335 + $0x218] sm:$0xff]
        %v486 = vld [vmem:[%s335 + $0x220] sm:$0xff]
        %v487 = vld [vmem:[%s335 + $0x228] sm:$0xff]
        %v488 = vld [vmem:[%s335 + $0x230] sm:$0xff]
        %v489 = vld [vmem:[%s335 + $0x238] sm:$0xff]
        %v490 = vld [vmem:[%s335 + $0x240] sm:$0xff]
        %v491 = vld [vmem:[%s335 + $0x248] sm:$0xff]
        %v492 = vld [vmem:[%s335 + $0x250] sm:$0xff]
        %v493 = vld [vmem:[%s335 + $0x258] sm:$0xff]
        %v494 = vld [vmem:[%s335 + $0x260] sm:$0xff]
        %v495 = vld [vmem:[%s335 + $0x268] sm:$0xff]
        %v496 = vld [vmem:[%s335 + $0x270] sm:$0xff]
        %v497 = vld [vmem:[%s335 + $0x278] sm:$0xff]
        %v498 = vld [vmem:[%s335 + $0x280] sm:$0xff]
        %v499 = vld [vmem:[%s335 + $0x288] sm:$0xff]
        %v500 = vld [vmem:[%s335 + $0x290] sm:$0xff]
        %v501 = vld [vmem:[%s335 + $0x298] sm:$0xff]
        %v502 = vld [vmem:[%s335 + $0x2a0] sm:$0xff]
        %v503 = vld [vmem:[%s335 + $0x2a8] sm:$0xff]
        %v504 = vld [vmem:[%s335 + $0x2b0] sm:$0xff]
        %v505 = vld [vmem:[%s335 + $0x2b8] sm:$0xff]
        %v506 = vld [vmem:[%s335 + $0x2c0] sm:$0xff]
        %v507 = vld [vmem:[%s335 + $0x2c8] sm:$0xff]
        %v508 = vld [vmem:[%s335 + $0x2d0] sm:$0xff]
        %v509 = vld [vmem:[%s335 + $0x2d8] sm:$0xff]
        %v510 = vld [vmem:[%s335 + $0x2e0] sm:$0xff]
        %v511 = vld [vmem:[%s335 + $0x2e8] sm:$0xff]
        %v512 = vld [vmem:[%s335 + $0x2f0] sm:$0xff]
        %v513 = vld [vmem:[%s335 + $0x2f8] sm:$0xff]
        %v514 = vld [vmem:[%s335 + $0x300] sm:$0xff]
        %v515 = vld [vmem:[%s335 + $0x308] sm:$0xff]
        %v516 = vld [vmem:[%s335 + $0x310] sm:$0xff]
        %v517 = vld [vmem:[%s335 + $0x318] sm:$0xff]
        %v518 = vld [vmem:[%s335 + $0x320] sm:$0xff]
        %v519 = vld [vmem:[%s335 + $0x328] sm:$0xff]
        %v520 = vld [vmem:[%s335 + $0x330] sm:$0xff]
        %v521 = vld [vmem:[%s335 + $0x338] sm:$0xff]
        %v522 = vld [vmem:[%s335 + $0x340] sm:$0xff]
        %v523 = vld [vmem:[%s335 + $0x348] sm:$0xff]
        %v524 = vld [vmem:[%s335 + $0x350] sm:$0xff]
        %v525 = vld [vmem:[%s335 + $0x358] sm:$0xff]
        %v526 = vld [vmem:[%s335 + $0x360] sm:$0xff]
        %v527 = vld [vmem:[%s335 + $0x368] sm:$0xff]
        %v528 = vld [vmem:[%s335 + $0x370] sm:$0xff]
        %v529 = vld [vmem:[%s335 + $0x378] sm:$0xff]
        %v530 = vld [vmem:[%s335 + $0x380] sm:$0xff]
        %v531 = vld [vmem:[%s335 + $0x388] sm:$0xff]
        %v532 = vld [vmem:[%s335 + $0x390] sm:$0xff]
        %v533 = vld [vmem:[%s335 + $0x398] sm:$0xff]
        %v534 = vld [vmem:[%s335 + $0x3a0] sm:$0xff]
        %v535 = vld [vmem:[%s335 + $0x3a8] sm:$0xff]
        %v536 = vld [vmem:[%s335 + $0x3b0] sm:$0xff]
        %v537 = vld [vmem:[%s335 + $0x3b8] sm:$0xff]
        %v538 = vld [vmem:[%s335 + $0x3c0] sm:$0xff]
        %v539 = vld [vmem:[%s335 + $0x3c8] sm:$0xff]
        %v540 = vld [vmem:[%s335 + $0x3d0] sm:$0xff]
        %v541 = vld [vmem:[%s335 + $0x3d8] sm:$0xff]
        %v542 = vld [vmem:[%s335 + $0x3e0] sm:$0xff]
        %v543 = vld [vmem:[%s335 + $0x3e8] sm:$0xff]
        %v544 = vld [vmem:[%s335 + $0x3f0] sm:$0xff]
        %v545 = vld [vmem:[%s335 + $0x3f8] sm:$0xff]
        %v548 = vunpack.c.l.b16 %v416
        %v549 = vunpack.c.h.b16 %v416
        %v550 = vunpack.c.l.b16 %v417
        %v551 = vunpack.c.h.b16 %v417
        %v552 = vpack.c.b16 %v550, %v548
        %v553 = vpack.c.b16 %v551, %v549
        %v684 = vunpack.c.l.b16 %v418
        %v685 = vunpack.c.h.b16 %v418
        %v686 = vunpack.c.l.b16 %v419
        %v687 = vunpack.c.h.b16 %v419
        %v688 = vunpack.c.l.b16 %v420
        %v689 = vunpack.c.h.b16 %v420
        %v690 = vunpack.c.l.b16 %v421
        %v691 = vunpack.c.h.b16 %v421
        %v692 = vunpack.c.l.b16 %v422
        %v693 = vunpack.c.h.b16 %v422
        %v694 = vunpack.c.l.b16 %v423
        %v695 = vunpack.c.h.b16 %v423
        %v696 = vunpack.c.l.b16 %v424
        %v697 = vunpack.c.h.b16 %v424
        %v698 = vunpack.c.l.b16 %v425
        %v699 = vunpack.c.h.b16 %v425
        %v700 = vunpack.c.l.b16 %v426
        %v701 = vunpack.c.h.b16 %v426
        %v702 = vunpack.c.l.b16 %v427
        %v703 = vunpack.c.h.b16 %v427
        %v704 = vunpack.c.l.b16 %v428
        %v705 = vunpack.c.h.b16 %v428
        %v706 = vunpack.c.l.b16 %v429
        %v707 = vunpack.c.h.b16 %v429
        %v708 = vunpack.c.l.b16 %v430
        %v709 = vunpack.c.h.b16 %v430
        %v710 = vunpack.c.l.b16 %v431
        %v711 = vunpack.c.h.b16 %v431
        %v712 = vunpack.c.l.b16 %v432
        %v713 = vunpack.c.h.b16 %v432
        %v714 = vunpack.c.l.b16 %v433
        %v715 = vunpack.c.h.b16 %v433
        %v716 = vunpack.c.l.b16 %v434
        %v717 = vunpack.c.h.b16 %v434
        %v718 = vunpack.c.l.b16 %v435
        %v719 = vunpack.c.h.b16 %v435
        %v720 = vunpack.c.l.b16 %v436
        %v721 = vunpack.c.h.b16 %v436
        %v722 = vunpack.c.l.b16 %v437
        %v723 = vunpack.c.h.b16 %v437
        %v724 = vunpack.c.l.b16 %v438
        %v725 = vunpack.c.h.b16 %v438
        %v726 = vunpack.c.l.b16 %v439
        %v727 = vunpack.c.h.b16 %v439
        %v728 = vunpack.c.l.b16 %v440
        %v729 = vunpack.c.h.b16 %v440
        %v730 = vunpack.c.l.b16 %v441
        %v731 = vunpack.c.h.b16 %v441
        %v732 = vunpack.c.l.b16 %v442
        %v733 = vunpack.c.h.b16 %v442
        %v734 = vunpack.c.l.b16 %v443
        %v735 = vunpack.c.h.b16 %v443
        %v736 = vunpack.c.l.b16 %v444
        %v737 = vunpack.c.h.b16 %v444
        %v738 = vunpack.c.l.b16 %v445
        %v739 = vunpack.c.h.b16 %v445
        %v740 = vunpack.c.l.b16 %v446
        %v741 = vunpack.c.h.b16 %v446
        %v742 = vunpack.c.l.b16 %v447
        %v743 = vunpack.c.h.b16 %v447
        %v744 = vunpack.c.l.b16 %v448
        %v745 = vunpack.c.h.b16 %v448
        %v746 = vunpack.c.l.b16 %v449
        %v747 = vunpack.c.h.b16 %v449
        %v748 = vunpack.c.l.b16 %v450
        %v749 = vunpack.c.h.b16 %v450
        %v750 = vunpack.c.l.b16 %v451
        %v751 = vunpack.c.h.b16 %v451
        %v752 = vunpack.c.l.b16 %v452
        %v753 = vunpack.c.h.b16 %v452
        %v754 = vunpack.c.l.b16 %v453
        %v755 = vunpack.c.h.b16 %v453
        %v756 = vunpack.c.l.b16 %v454
        %v757 = vunpack.c.h.b16 %v454
        %v758 = vunpack.c.l.b16 %v455
        %v759 = vunpack.c.h.b16 %v455
        %v760 = vunpack.c.l.b16 %v456
        %v761 = vunpack.c.h.b16 %v456
        %v762 = vunpack.c.l.b16 %v457
        %v763 = vunpack.c.h.b16 %v457
        %v764 = vunpack.c.l.b16 %v458
        %v765 = vunpack.c.h.b16 %v458
        %v766 = vunpack.c.l.b16 %v459
        %v767 = vunpack.c.h.b16 %v459
        %v768 = vunpack.c.l.b16 %v460
        %v769 = vunpack.c.h.b16 %v460
        %v770 = vunpack.c.l.b16 %v461
        %v771 = vunpack.c.h.b16 %v461
        %v772 = vunpack.c.l.b16 %v462
        %v773 = vunpack.c.h.b16 %v462
        %v774 = vunpack.c.l.b16 %v463
        %v775 = vunpack.c.h.b16 %v463
        %v776 = vunpack.c.l.b16 %v464
        %v777 = vunpack.c.h.b16 %v464
        %v778 = vunpack.c.l.b16 %v465
        %v779 = vunpack.c.h.b16 %v465
        %v780 = vunpack.c.l.b16 %v466
        %v781 = vunpack.c.h.b16 %v466
        %v782 = vunpack.c.l.b16 %v467
        %v783 = vunpack.c.h.b16 %v467
        %v784 = vunpack.c.l.b16 %v468
        %v785 = vunpack.c.h.b16 %v468
        %v786 = vunpack.c.l.b16 %v469
        %v787 = vunpack.c.h.b16 %v469
        %v788 = vunpack.c.l.b16 %v470
        %v789 = vunpack.c.h.b16 %v470
        %v790 = vunpack.c.l.b16 %v471
        %v791 = vunpack.c.h.b16 %v471
        %v792 = vunpack.c.l.b16 %v472
        %v793 = vunpack.c.h.b16 %v472
        %v794 = vunpack.c.l.b16 %v473
        %v795 = vunpack.c.h.b16 %v473
        %v796 = vunpack.c.l.b16 %v474
        %v797 = vunpack.c.h.b16 %v474
        %v798 = vunpack.c.l.b16 %v475
        %v799 = vunpack.c.h.b16 %v475
        %v800 = vunpack.c.l.b16 %v476
        %v801 = vunpack.c.h.b16 %v476
        %v802 = vunpack.c.l.b16 %v477
        %v803 = vunpack.c.h.b16 %v477
        %v804 = vunpack.c.l.b16 %v478
        %v805 = vunpack.c.h.b16 %v478
        %v806 = vunpack.c.l.b16 %v479
        %v807 = vunpack.c.h.b16 %v479
        %v808 = vunpack.c.l.b16 %v480
        %v809 = vunpack.c.h.b16 %v480
        %v810 = vunpack.c.l.b16 %v481
        %v811 = vunpack.c.h.b16 %v481
        %v812 = vunpack.c.l.b16 %v482
        %v813 = vunpack.c.h.b16 %v482
        %v814 = vunpack.c.l.b16 %v483
        %v815 = vunpack.c.h.b16 %v483
        %v816 = vunpack.c.l.b16 %v484
        %v817 = vunpack.c.h.b16 %v484
        %v818 = vunpack.c.l.b16 %v485
        %v819 = vunpack.c.h.b16 %v485
        %v820 = vunpack.c.l.b16 %v486
        %v821 = vunpack.c.h.b16 %v486
        %v822 = vunpack.c.l.b16 %v487
        %v823 = vunpack.c.h.b16 %v487
        %v824 = vunpack.c.l.b16 %v488
        %v825 = vunpack.c.h.b16 %v488
        %v826 = vunpack.c.l.b16 %v489
        %v827 = vunpack.c.h.b16 %v489
        %v828 = vunpack.c.l.b16 %v490
        %v829 = vunpack.c.h.b16 %v490
        %v830 = vunpack.c.l.b16 %v491
        %v831 = vunpack.c.h.b16 %v491
        %v832 = vunpack.c.l.b16 %v492
        %v833 = vunpack.c.h.b16 %v492
        %v834 = vunpack.c.l.b16 %v493
        %v835 = vunpack.c.h.b16 %v493
        %v836 = vunpack.c.l.b16 %v494
        %v837 = vunpack.c.h.b16 %v494
        %v838 = vunpack.c.l.b16 %v495
        %v839 = vunpack.c.h.b16 %v495
        %v840 = vunpack.c.l.b16 %v496
        %v841 = vunpack.c.h.b16 %v496
        %v842 = vunpack.c.l.b16 %v497
        %v843 = vunpack.c.h.b16 %v497
        %v844 = vunpack.c.l.b16 %v498
        %v845 = vunpack.c.h.b16 %v498
        %v846 = vunpack.c.l.b16 %v499
        %v847 = vunpack.c.h.b16 %v499
        %v848 = vunpack.c.l.b16 %v500
        %v849 = vunpack.c.h.b16 %v500
        %v850 = vunpack.c.l.b16 %v501
        %v851 = vunpack.c.h.b16 %v501
        %v852 = vunpack.c.l.b16 %v502
        %v853 = vunpack.c.h.b16 %v502
        %v854 = vunpack.c.l.b16 %v503
        %v855 = vunpack.c.h.b16 %v503
        %v856 = vunpack.c.l.b16 %v504
        %v857 = vunpack.c.h.b16 %v504
        %v858 = vunpack.c.l.b16 %v505
        %v859 = vunpack.c.h.b16 %v505
        %v860 = vunpack.c.l.b16 %v506
        %v861 = vunpack.c.h.b16 %v506
        %v862 = vunpack.c.l.b16 %v507
        %v863 = vunpack.c.h.b16 %v507
        %v864 = vunpack.c.l.b16 %v508
        %v865 = vunpack.c.h.b16 %v508
        %v866 = vunpack.c.l.b16 %v509
        %v867 = vunpack.c.h.b16 %v509
        %v868 = vunpack.c.l.b16 %v510
        %v869 = vunpack.c.h.b16 %v510
        %v870 = vunpack.c.l.b16 %v511
        %v871 = vunpack.c.h.b16 %v511
        %v872 = vunpack.c.l.b16 %v512
        %v873 = vunpack.c.h.b16 %v512
        %v874 = vunpack.c.l.b16 %v513
        %v875 = vunpack.c.h.b16 %v513
        %v876 = vunpack.c.l.b16 %v514
        %v877 = vunpack.c.h.b16 %v514
        %v878 = vunpack.c.l.b16 %v515
        %v879 = vunpack.c.h.b16 %v515
        %v880 = vunpack.c.l.b16 %v516
        %v881 = vunpack.c.h.b16 %v516
        %v882 = vunpack.c.l.b16 %v517
        %v883 = vunpack.c.h.b16 %v517
        %v884 = vunpack.c.l.b16 %v518
        %v885 = vunpack.c.h.b16 %v518
        %v886 = vunpack.c.l.b16 %v519
        %v887 = vunpack.c.h.b16 %v519
        %v888 = vunpack.c.l.b16 %v520
        %v889 = vunpack.c.h.b16 %v520
        %v890 = vunpack.c.l.b16 %v521
        %v891 = vunpack.c.h.b16 %v521
        %v892 = vunpack.c.l.b16 %v522
        %v893 = vunpack.c.h.b16 %v522
        %v894 = vunpack.c.l.b16 %v523
        %v895 = vunpack.c.h.b16 %v523
        %v896 = vunpack.c.l.b16 %v524
        %v897 = vunpack.c.h.b16 %v524
        %v898 = vunpack.c.l.b16 %v525
        %v899 = vunpack.c.h.b16 %v525
        %v900 = vunpack.c.l.b16 %v526
        %v901 = vunpack.c.h.b16 %v526
        %v902 = vunpack.c.l.b16 %v527
        %v903 = vunpack.c.h.b16 %v527
        %v904 = vunpack.c.l.b16 %v528
        %v905 = vunpack.c.h.b16 %v528
        %v906 = vunpack.c.l.b16 %v529
        %v907 = vunpack.c.h.b16 %v529
        %v908 = vunpack.c.l.b16 %v530
        %v909 = vunpack.c.h.b16 %v530
        %v910 = vunpack.c.l.b16 %v531
        %v911 = vunpack.c.h.b16 %v531
        %v912 = vunpack.c.l.b16 %v532
        %v913 = vunpack.c.h.b16 %v532
        %v914 = vunpack.c.l.b16 %v533
        %v915 = vunpack.c.h.b16 %v533
        %v916 = vunpack.c.l.b16 %v534
        %v917 = vunpack.c.h.b16 %v534
        %v918 = vunpack.c.l.b16 %v535
        %v919 = vunpack.c.h.b16 %v535
        %v920 = vunpack.c.l.b16 %v536
        %v921 = vunpack.c.h.b16 %v536
        %v922 = vunpack.c.l.b16 %v537
        %v923 = vunpack.c.h.b16 %v537
        %v924 = vunpack.c.l.b16 %v538
        %v925 = vunpack.c.h.b16 %v538
        %v926 = vunpack.c.l.b16 %v539
        %v927 = vunpack.c.h.b16 %v539
        %v928 = vunpack.c.l.b16 %v540
        %v929 = vunpack.c.h.b16 %v540
        %v930 = vunpack.c.l.b16 %v541
        %v931 = vunpack.c.h.b16 %v541
        %v932 = vunpack.c.l.b16 %v542
        %v933 = vunpack.c.h.b16 %v542
        %v934 = vunpack.c.l.b16 %v543
        %v935 = vunpack.c.h.b16 %v543
        %v936 = vunpack.c.l.b16 %v544
        %v937 = vunpack.c.h.b16 %v544
        %v938 = vunpack.c.l.b16 %v545
        %v939 = vunpack.c.h.b16 %v545
        %v940 = vpack.c.b16 %v692, %v684
        %v941 = vpack.c.b16 %v693, %v685
        %v942 = vpack.c.b16 %v694, %v686
        %v943 = vpack.c.b16 %v695, %v687
        %v944 = vpack.c.b16 %v696, %v688
        %v945 = vpack.c.b16 %v697, %v689
        %v946 = vpack.c.b16 %v698, %v690
        %v947 = vpack.c.b16 %v699, %v691
        %v948 = vpack.c.b16 %v708, %v700
        %v949 = vpack.c.b16 %v709, %v701
        %v950 = vpack.c.b16 %v710, %v702
        %v951 = vpack.c.b16 %v711, %v703
        %v952 = vpack.c.b16 %v712, %v704
        %v953 = vpack.c.b16 %v713, %v705
        %v954 = vpack.c.b16 %v714, %v706
        %v955 = vpack.c.b16 %v715, %v707
        %v956 = vpack.c.b16 %v724, %v716
        %v957 = vpack.c.b16 %v725, %v717
        %v958 = vpack.c.b16 %v726, %v718
        %v959 = vpack.c.b16 %v727, %v719
        %v960 = vpack.c.b16 %v728, %v720
        %v961 = vpack.c.b16 %v729, %v721
        %v962 = vpack.c.b16 %v730, %v722
        %v963 = vpack.c.b16 %v731, %v723
        %v964 = vpack.c.b16 %v740, %v732
        %v965 = vpack.c.b16 %v741, %v733
        %v966 = vpack.c.b16 %v742, %v734
        %v967 = vpack.c.b16 %v743, %v735
        %v968 = vpack.c.b16 %v744, %v736
        %v969 = vpack.c.b16 %v745, %v737
        %v970 = vpack.c.b16 %v746, %v738
        %v971 = vpack.c.b16 %v747, %v739
        %v972 = vpack.c.b16 %v756, %v748
        %v973 = vpack.c.b16 %v757, %v749
        %v974 = vpack.c.b16 %v758, %v750
        %v975 = vpack.c.b16 %v759, %v751
        %v976 = vpack.c.b16 %v760, %v752
        %v977 = vpack.c.b16 %v761, %v753
        %v978 = vpack.c.b16 %v762, %v754
        %v979 = vpack.c.b16 %v763, %v755
        %v980 = vpack.c.b16 %v772, %v764
        %v981 = vpack.c.b16 %v773, %v765
        %v982 = vpack.c.b16 %v774, %v766
        %v983 = vpack.c.b16 %v775, %v767
        %v984 = vpack.c.b16 %v776, %v768
        %v985 = vpack.c.b16 %v777, %v769
        %v986 = vpack.c.b16 %v778, %v770
        %v987 = vpack.c.b16 %v779, %v771
        %v988 = vpack.c.b16 %v788, %v780
        %v989 = vpack.c.b16 %v789, %v781
        %v990 = vpack.c.b16 %v790, %v782
        %v991 = vpack.c.b16 %v791, %v783
        %v992 = vpack.c.b16 %v792, %v784
        %v993 = vpack.c.b16 %v793, %v785
        %v994 = vpack.c.b16 %v794, %v786
        %v995 = vpack.c.b16 %v795, %v787
        %v996 = vpack.c.b16 %v804, %v796
        %v997 = vpack.c.b16 %v805, %v797
        %v998 = vpack.c.b16 %v806, %v798
        %v999 = vpack.c.b16 %v807, %v799
        %v1000 = vpack.c.b16 %v808, %v800
        %v1001 = vpack.c.b16 %v809, %v801
        %v1002 = vpack.c.b16 %v810, %v802
        %v1003 = vpack.c.b16 %v811, %v803
        %v1004 = vpack.c.b16 %v820, %v812
        %v1005 = vpack.c.b16 %v821, %v813
        %v1006 = vpack.c.b16 %v822, %v814
        %v1007 = vpack.c.b16 %v823, %v815
        %v1008 = vpack.c.b16 %v824, %v816
        %v1009 = vpack.c.b16 %v825, %v817
        %v1010 = vpack.c.b16 %v826, %v818
        %v1011 = vpack.c.b16 %v827, %v819
        %v1012 = vpack.c.b16 %v836, %v828
        %v1013 = vpack.c.b16 %v837, %v829
        %v1014 = vpack.c.b16 %v838, %v830
        %v1015 = vpack.c.b16 %v839, %v831
        %v1016 = vpack.c.b16 %v840, %v832
        %v1017 = vpack.c.b16 %v841, %v833
        %v1018 = vpack.c.b16 %v842, %v834
        %v1019 = vpack.c.b16 %v843, %v835
        %v1020 = vpack.c.b16 %v852, %v844
        %v1021 = vpack.c.b16 %v853, %v845
        %v1022 = vpack.c.b16 %v854, %v846
        %v1023 = vpack.c.b16 %v855, %v847
        %v1024 = vpack.c.b16 %v856, %v848
        %v1025 = vpack.c.b16 %v857, %v849
        %v1026 = vpack.c.b16 %v858, %v850
        %v1027 = vpack.c.b16 %v859, %v851
        %v1028 = vpack.c.b16 %v868, %v860
        %v1029 = vpack.c.b16 %v869, %v861
        %v1030 = vpack.c.b16 %v870, %v862
        %v1031 = vpack.c.b16 %v871, %v863
        %v1032 = vpack.c.b16 %v872, %v864
        %v1033 = vpack.c.b16 %v873, %v865
        %v1034 = vpack.c.b16 %v874, %v866
        %v1035 = vpack.c.b16 %v875, %v867
        %v1036 = vpack.c.b16 %v884, %v876
        %v1037 = vpack.c.b16 %v885, %v877
        %v1038 = vpack.c.b16 %v886, %v878
        %v1039 = vpack.c.b16 %v887, %v879
        %v1040 = vpack.c.b16 %v888, %v880
        %v1041 = vpack.c.b16 %v889, %v881
        %v1042 = vpack.c.b16 %v890, %v882
        %v1043 = vpack.c.b16 %v891, %v883
        %v1044 = vpack.c.b16 %v900, %v892
        %v1045 = vpack.c.b16 %v901, %v893
        %v1046 = vpack.c.b16 %v902, %v894
        %v1047 = vpack.c.b16 %v903, %v895
        %v1048 = vpack.c.b16 %v904, %v896
        %v1049 = vpack.c.b16 %v905, %v897
        %v1050 = vpack.c.b16 %v906, %v898
        %v1051 = vpack.c.b16 %v907, %v899
        %v1052 = vpack.c.b16 %v916, %v908
        %v1053 = vpack.c.b16 %v917, %v909
        %v1054 = vpack.c.b16 %v918, %v910
        %v1055 = vpack.c.b16 %v919, %v911
        %v1056 = vpack.c.b16 %v920, %v912
        %v1057 = vpack.c.b16 %v921, %v913
        %v1058 = vpack.c.b16 %v922, %v914
        %v1059 = vpack.c.b16 %v923, %v915
        %v1060 = vpack.c.b16 %v932, %v924
        %v1061 = vpack.c.b16 %v933, %v925
        %v1062 = vpack.c.b16 %v934, %v926
        %v1063 = vpack.c.b16 %v935, %v927
        %v1064 = vpack.c.b16 %v936, %v928
        %v1065 = vpack.c.b16 %v937, %v929
        %v1066 = vpack.c.b16 %v938, %v930
        %v1067 = vpack.c.b16 %v939, %v931
        %1196 = vmatprep.subr.bf16.mxu0 %v941
        %1197 = vmatpush1.bf16.msra.mxu0 %v940
        %1198 = vmatprep.subr.bf16.mxu0 %v949
        %1199 = vmatpush1.bf16.msra.mxu0 %v948
        %1200 = vmatprep.subr.bf16.mxu0 %v957
        %1201 = vmatpush1.bf16.msra.mxu0 %v956
        %1202 = vmatprep.subr.bf16.mxu0 %v965
        %1203 = vmatpush1.bf16.msra.mxu0 %v964
        %1204 = vmatprep.subr.bf16.mxu0 %v973
        %1205 = vmatpush1.bf16.msra.mxu0 %v972
        %1206 = vmatprep.subr.bf16.mxu0 %v981
        %1207 = vmatpush1.bf16.msra.mxu0 %v980
        %1208 = vmatprep.subr.bf16.mxu0 %v989
        %1209 = vmatpush1.bf16.msra.mxu0 %v988
        %1210 = vmatprep.subr.bf16.mxu0 %v997
        %1211 = vmatpush1.bf16.msra.mxu0 %v996
        %1212 = vmatprep.subr.bf16.mxu0 %v1005
        %1213 = vmatpush1.bf16.msra.mxu0 %v1004
        %1214 = vmatprep.subr.bf16.mxu0 %v1013
        %1215 = vmatpush1.bf16.msra.mxu0 %v1012
        %1216 = vmatprep.subr.bf16.mxu0 %v1021
        %1217 = vmatpush1.bf16.msra.mxu0 %v1020
        %1218 = vmatprep.subr.bf16.mxu0 %v1029
        %1219 = vmatpush1.bf16.msra.mxu0 %v1028
        %1220 = vmatprep.subr.bf16.mxu0 %v1037
        %1221 = vmatpush1.bf16.msra.mxu0 %v1036
        %1222 = vmatprep.subr.bf16.mxu0 %v1045
        %1223 = vmatpush1.bf16.msra.mxu0 %v1044
        %1224 = vmatprep.subr.bf16.mxu0 %v1053
        %1225 = vmatpush1.bf16.msra.mxu0 %v1052
        %1226 = vmatprep.subr.bf16.mxu0 %v1061
        %1227 = vmatpush1.bf16.msra.mxu0 %v1060
        %1228 = vmatprep.mubr.bf16.mxu0 %v553
        %1229 = vmatmul.mubr.bf16.gmra.mrb[0].mxu0 %v552
        %v1230 = vpop.f32.mrb[0].mxu0
        %v1231 = vadd.f32 0.0, %v1230
        %v1232 = vpop.f32.mrb[0].mxu0
        %v1233 = vadd.f32 0.0, %v1232
        %v1234 = vpop.f32.mrb[0].mxu0
        %v1235 = vadd.f32 0.0, %v1234
        %v1236 = vpop.f32.mrb[0].mxu0
        %v1237 = vadd.f32 0.0, %v1236
        %1238 = vdwg.mxu0
        %1239 = vmatprep.subr.bf16.mxu0 %v943
        %1240 = vmatpush1.bf16.msra.mxu0 %v942
        %1241 = vmatprep.subr.bf16.mxu0 %v951
        %1242 = vmatpush1.bf16.msra.mxu0 %v950
        %1243 = vmatprep.subr.bf16.mxu0 %v959
        %1244 = vmatpush1.bf16.msra.mxu0 %v958
        %1245 = vmatprep.subr.bf16.mxu0 %v967
        %1246 = vmatpush1.bf16.msra.mxu0 %v966
        %1247 = vmatprep.subr.bf16.mxu0 %v975
        %1248 = vmatpush1.bf16.msra.mxu0 %v974
        %1249 = vmatprep.subr.bf16.mxu0 %v983
        %1250 = vmatpush1.bf16.msra.mxu0 %v982
        %1251 = vmatprep.subr.bf16.mxu0 %v991
        %1252 = vmatpush1.bf16.msra.mxu0 %v990
        %1253 = vmatprep.subr.bf16.mxu0 %v999
        %1254 = vmatpush1.bf16.msra.mxu0 %v998
        %1255 = vmatprep.subr.bf16.mxu0 %v1007
        %1256 = vmatpush1.bf16.msra.mxu0 %v1006
        %1257 = vmatprep.subr.bf16.mxu0 %v1015
        %1258 = vmatpush1.bf16.msra.mxu0 %v1014
        %1259 = vmatprep.subr.bf16.mxu0 %v1023
        %1260 = vmatpush1.bf16.msra.mxu0 %v1022
        %1261 = vmatprep.subr.bf16.mxu0 %v1031
        %1262 = vmatpush1.bf16.msra.mxu0 %v1030
        %1263 = vmatprep.subr.bf16.mxu0 %v1039
        %1264 = vmatpush1.bf16.msra.mxu0 %v1038
        %1265 = vmatprep.subr.bf16.mxu0 %v1047
        %1266 = vmatpush1.bf16.msra.mxu0 %v1046
        %1267 = vmatprep.subr.bf16.mxu0 %v1055
        %1268 = vmatpush1.bf16.msra.mxu0 %v1054
        %1269 = vmatprep.subr.bf16.mxu0 %v1063
        %1270 = vmatpush1.bf16.msra.mxu0 %v1062
        %1271 = vmatprep.mubr.bf16.mxu0 %v553
        %1272 = vmatmul.mubr.bf16.gmra.mrb[0].mxu0 %v552
        %v1273 = vpop.f32.mrb[0].mxu0
        %v1274 = vadd.f32 0.0, %v1273
        %v1275 = vpop.f32.mrb[0].mxu0
        %v1276 = vadd.f32 0.0, %v1275
        %v1277 = vpop.f32.mrb[0].mxu0
        %v1278 = vadd.f32 0.0, %v1277
        %v1279 = vpop.f32.mrb[0].mxu0
        %v1280 = vadd.f32 0.0, %v1279
        %1281 = vdwg.mxu0
        %1282 = vmatprep.subr.bf16.mxu0 %v945
        %1283 = vmatpush1.bf16.msra.mxu0 %v944
        %1284 = vmatprep.subr.bf16.mxu0 %v953
        %1285 = vmatpush1.bf16.msra.mxu0 %v952
        %1286 = vmatprep.subr.bf16.mxu0 %v961
        %1287 = vmatpush1.bf16.msra.mxu0 %v960
        %1288 = vmatprep.subr.bf16.mxu0 %v969
        %1289 = vmatpush1.bf16.msra.mxu0 %v968
        %1290 = vmatprep.subr.bf16.mxu0 %v977
        %1291 = vmatpush1.bf16.msra.mxu0 %v976
        %1292 = vmatprep.subr.bf16.mxu0 %v985
        %1293 = vmatpush1.bf16.msra.mxu0 %v984
        %1294 = vmatprep.subr.bf16.mxu0 %v993
        %1295 = vmatpush1.bf16.msra.mxu0 %v992
        %1296 = vmatprep.subr.bf16.mxu0 %v1001
        %1297 = vmatpush1.bf16.msra.mxu0 %v1000
        %1298 = vmatprep.subr.bf16.mxu0 %v1009
        %1299 = vmatpush1.bf16.msra.mxu0 %v1008
        %1300 = vmatprep.subr.bf16.mxu0 %v1017
        %1301 = vmatpush1.bf16.msra.mxu0 %v1016
        %1302 = vmatprep.subr.bf16.mxu0 %v1025
        %1303 = vmatpush1.bf16.msra.mxu0 %v1024
        %1304 = vmatprep.subr.bf16.mxu0 %v1033
        %1305 = vmatpush1.bf16.msra.mxu0 %v1032
        %1306 = vmatprep.subr.bf16.mxu0 %v1041
        %1307 = vmatpush1.bf16.msra.mxu0 %v1040
        %1308 = vmatprep.subr.bf16.mxu0 %v1049
        %1309 = vmatpush1.bf16.msra.mxu0 %v1048
        %1310 = vmatprep.subr.bf16.mxu0 %v1057
        %1311 = vmatpush1.bf16.msra.mxu0 %v1056
        %1312 = vmatprep.subr.bf16.mxu0 %v1065
        %1313 = vmatpush1.bf16.msra.mxu0 %v1064
        %1314 = vmatprep.mubr.bf16.mxu0 %v553
        %1315 = vmatmul.mubr.bf16.gmra.mrb[0].mxu0 %v552
        %v1316 = vpop.f32.mrb[0].mxu0
        %v1317 = vadd.f32 0.0, %v1316
        %v1318 = vpop.f32.mrb[0].mxu0
        %v1319 = vadd.f32 0.0, %v1318
        %v1320 = vpop.f32.mrb[0].mxu0
        %v1321 = vadd.f32 0.0, %v1320
        %v1322 = vpop.f32.mrb[0].mxu0
        %v1323 = vadd.f32 0.0, %v1322
        %1324 = vdwg.mxu0
        %1325 = vmatprep.subr.bf16.mxu0 %v947
        %1326 = vmatpush1.bf16.msra.mxu0 %v946
        %1327 = vmatprep.subr.bf16.mxu0 %v955
        %1328 = vmatpush1.bf16.msra.mxu0 %v954
        %1329 = vmatprep.subr.bf16.mxu0 %v963
        %1330 = vmatpush1.bf16.msra.mxu0 %v962
        %1331 = vmatprep.subr.bf16.mxu0 %v971
        %1332 = vmatpush1.bf16.msra.mxu0 %v970
        %1333 = vmatprep.subr.bf16.mxu0 %v979
        %1334 = vmatpush1.bf16.msra.mxu0 %v978
        %1335 = vmatprep.subr.bf16.mxu0 %v987
        %1336 = vmatpush1.bf16.msra.mxu0 %v986
        %1337 = vmatprep.subr.bf16.mxu0 %v995
        %1338 = vmatpush1.bf16.msra.mxu0 %v994
        %1339 = vmatprep.subr.bf16.mxu0 %v1003
        %1340 = vmatpush1.bf16.msra.mxu0 %v1002
        %1341 = vmatprep.subr.bf16.mxu0 %v1011
        %1342 = vmatpush1.bf16.msra.mxu0 %v1010
        %1343 = vmatprep.subr.bf16.mxu0 %v1019
        %1344 = vmatpush1.bf16.msra.mxu0 %v1018
        %1345 = vmatprep.subr.bf16.mxu0 %v1027
        %1346 = vmatpush1.bf16.msra.mxu0 %v1026
        %1347 = vmatprep.subr.bf16.mxu0 %v1035
        %1348 = vmatpush1.bf16.msra.mxu0 %v1034
        %1349 = vmatprep.subr.bf16.mxu0 %v1043
        %1350 = vmatpush1.bf16.msra.mxu0 %v1042
        %1351 = vmatprep.subr.bf16.mxu0 %v1051
        %1352 = vmatpush1.bf16.msra.mxu0 %v1050
        %1353 = vmatprep.subr.bf16.mxu0 %v1059
        %1354 = vmatpush1.bf16.msra.mxu0 %v1058
        %1355 = vmatprep.subr.bf16.mxu0 %v1067
        %1356 = vmatpush1.bf16.msra.mxu0 %v1066
        %1357 = vmatprep.mubr.bf16.mxu0 %v553
        %1358 = vmatmul.mubr.bf16.gmra.mrb[0].mxu0 %v552
        %v1359 = vpop.f32.mrb[0].mxu0
        %v1360 = vadd.f32 0.0, %v1359
        %v1361 = vpop.f32.mrb[0].mxu0
        %v1362 = vadd.f32 0.0, %v1361
        %v1363 = vpop.f32.mrb[0].mxu0
        %v1364 = vadd.f32 0.0, %v1363
        %v1365 = vpop.f32.mrb[0].mxu0
        %v1366 = vadd.f32 0.0, %v1365
        %1367 = vdwg.mxu0
        %v1368 = vadd.f32 %v400, %v1231
        %v1369 = vadd.f32 %v401, %v1233
        %v1370 = vadd.f32 %v402, %v1274
        %v1371 = vadd.f32 %v403, %v1276
        %v1372 = vadd.f32 %v404, %v1317
        %v1373 = vadd.f32 %v405, %v1319
        %v1374 = vadd.f32 %v406, %v1360
        %v1375 = vadd.f32 %v407, %v1362
        %v1376 = vadd.f32 %v408, %v1235
        %v1377 = vadd.f32 %v409, %v1237
        %v1378 = vadd.f32 %v410, %v1278
        %v1379 = vadd.f32 %v411, %v1280
        %v1380 = vadd.f32 %v412, %v1321
        %v1381 = vadd.f32 %v413, %v1323
        %v1382 = vadd.f32 %v414, %v1364
        %v1383 = vadd.f32 %v415, %v1366
        %1384 = vst [vmem:[#allocation2] sm:$0xff] %v1368
        %1385 = vst [vmem:[#allocation2 + $0x8] sm:$0xff] %v1369
        %1386 = vst [vmem:[#allocation2 + $0x10] sm:$0xff] %v1370
        %1387 = vst [vmem:[#allocation2 + $0x18] sm:$0xff] %v1371
        %1388 = vst [vmem:[#allocation2 + $0x20] sm:$0xff] %v1372
        %1389 = vst [vmem:[#allocation2 + $0x28] sm:$0xff] %v1373
        %1390 = vst [vmem:[#allocation2 + $0x30] sm:$0xff] %v1374
        %1391 = vst [vmem:[#allocation2 + $0x38] sm:$0xff] %v1375
        %1392 = vst [vmem:[#allocation2 + $0x40] sm:$0xff] %v1376
        %1393 = vst [vmem:[#allocation2 + $0x48] sm:$0xff] %v1377
        %1394 = vst [vmem:[#allocation2 + $0x50] sm:$0xff] %v1378
        %1395 = vst [vmem:[#allocation2 + $0x58] sm:$0xff] %v1379
        %1396 = vst [vmem:[#allocation2 + $0x60] sm:$0xff] %v1380
        %1397 = vst [vmem:[#allocation2 + $0x68] sm:$0xff] %v1381
        %1398 = vst [vmem:[#allocation2 + $0x70] sm:$0xff] %v1382
        %1399 = vst [vmem:[#allocation2 + $0x78] sm:$0xff] %v1383
        %p1400 = scmp.eq.s32.totalorder %s32, 1
        // Predicated region
        $region57: #{tpu_custom_call.1} parent=35 // pred_check
          %p1401 = pneg %p1400
        $region58: #{tpu_custom_call.1} parent=35 // pred_check_branch
          %1403 = sbr.rel (%p1401) target = $region60
        $region59: #{tpu_custom_call.1} parent=35 // pred_region
          %v1404 = vld [vmem:[#allocation8] sm:$0xff]
          %v1405 = vld [vmem:[#allocation8 + $0x8] sm:$0xff]
          %v1406 = vld [vmem:[#allocation9] sm:$0xff]
          %v1407 = vld [vmem:[#allocation9 + $0x8] sm:$0xff]
          %v1408 = vld [vmem:[#allocation2] sm:$0xff]
          %v1409 = vld [vmem:[#allocation2 + $0x40] sm:$0xff]
          %1412 = vrot.lane.b32.xlu0 %v1408, 64
          %v1413 = vpop.permute.xlu0 %1412
          %1414 = vrot.lane.b32.xlu0 %v1409, 64
          %v1415 = vpop.permute.xlu0 %1414
          %v1418 = vmul.f32 %v1408, %v1404
          %v1419 = vmul.f32 %v1409, %v1405
          %v1420 = vmul.f32 %v1413, %v1406
          %v1421 = vmul.f32 %v1415, %v1407
          %v1422 = vadd.f32 %v1418, %v1420
          %v1423 = vadd.f32 %v1419, %v1421
          %v1424 = vmul.f32 %v1422, 0.088388346
          %v1425 = vmul.f32 %v1423, 0.088388346
          %v1426 = vpack.c.bf16 %v1425, %v1424
          %v1428 = vunpack.c.l.b16 %v1426
          %v1429 = vunpack.c.h.b16 %v1426
          %v1430 = vpack.c.b16 %v1428, %v1428
          %v1431 = vpack.c.b16 %v1429, %v1429
          %1434 = vst [vmem:[#allocation11] sm:$0xf] %v1430
          %1435 = vst [vmem:[#allocation11 + $0x10] sm:$0xf] %v1431
          %v1436 = vld [vmem:[#allocation2 + $0x8] sm:$0xff]
          %v1437 = vld [vmem:[#allocation2 + $0x48] sm:$0xff]
          %1440 = vrot.lane.b32.xlu0 %v1436, 64
          %v1441 = vpop.permute.xlu0 %1440
          %1442 = vrot.lane.b32.xlu0 %v1437, 64
          %v1443 = vpop.permute.xlu0 %1442
          %v1446 = vmul.f32 %v1436, %v1404
          %v1447 = vmul.f32 %v1437, %v1405
          %v1448 = vmul.f32 %v1441, %v1406
          %v1449 = vmul.f32 %v1443, %v1407
          %v1450 = vadd.f32 %v1446, %v1448
          %v1451 = vadd.f32 %v1447, %v1449
          %v1452 = vmul.f32 %v1450, 0.088388346
          %v1453 = vmul.f32 %v1451, 0.088388346
          %v1454 = vpack.c.bf16 %v1453, %v1452
          %v1456 = vunpack.c.l.b16 %v1454
          %v1457 = vunpack.c.h.b16 %v1454
          %v1458 = vpack.c.b16 %v1456, %v1456
          %v1459 = vpack.c.b16 %v1457, %v1457
          %1462 = vst [vmem:[#allocation11 + $0x4] sm:$0xf] %v1458
          %1463 = vst [vmem:[#allocation11 + $0x14] sm:$0xf] %v1459
          %v1464 = vld [vmem:[#allocation2 + $0x10] sm:$0xff]
          %v1465 = vld [vmem:[#allocation2 + $0x50] sm:$0xff]
          %1468 = vrot.lane.b32.xlu0 %v1464, 64
          %v1469 = vpop.permute.xlu0 %1468
          %1470 = vrot.lane.b32.xlu0 %v1465, 64
          %v1471 = vpop.permute.xlu0 %1470
          %v1474 = vmul.f32 %v1464, %v1404
          %v1475 = vmul.f32 %v1465, %v1405
          %v1476 = vmul.f32 %v1469, %v1406
          %v1477 = vmul.f32 %v1471, %v1407
          %v1478 = vadd.f32 %v1474, %v1476
          %v1479 = vadd.f32 %v1475, %v1477
          %v1480 = vmul.f32 %v1478, 0.088388346
          %v1481 = vmul.f32 %v1479, 0.088388346
          %v1482 = vpack.c.bf16 %v1481, %v1480
          %v1484 = vunpack.c.l.b16 %v1482
          %v1485 = vunpack.c.h.b16 %v1482
          %v1486 = vpack.c.b16 %v1484, %v1484
          %v1487 = vpack.c.b16 %v1485, %v1485
          %1490 = vst [vmem:[#allocation11 + $0x8] sm:$0xf] %v1486
          %1491 = vst [vmem:[#allocation11 + $0x18] sm:$0xf] %v1487
          %v1492 = vld [vmem:[#allocation2 + $0x18] sm:$0xff]
          %v1493 = vld [vmem:[#allocation2 + $0x58] sm:$0xff]
          %1496 = vrot.lane.b32.xlu0 %v1492, 64
          %v1497 = vpop.permute.xlu0 %1496
          %1498 = vrot.lane.b32.xlu0 %v1493, 64
          %v1499 = vpop.permute.xlu0 %1498
          %v1502 = vmul.f32 %v1492, %v1404
          %v1503 = vmul.f32 %v1493, %v1405
          %v1504 = vmul.f32 %v1497, %v1406
          %v1505 = vmul.f32 %v1499, %v1407
          %v1506 = vadd.f32 %v1502, %v1504
          %v1507 = vadd.f32 %v1503, %v1505
          %v1508 = vmul.f32 %v1506, 0.088388346
          %v1509 = vmul.f32 %v1507, 0.088388346
          %v1510 = vpack.c.bf16 %v1509, %v1508
          %v1512 = vunpack.c.l.b16 %v1510
          %v1513 = vunpack.c.h.b16 %v1510
          %v1514 = vpack.c.b16 %v1512, %v1512
          %v1515 = vpack.c.b16 %v1513, %v1513
          %1518 = vst [vmem:[#allocation11 + $0xc] sm:$0xf] %v1514
          %1519 = vst [vmem:[#allocation11 + $0x1c] sm:$0xf] %v1515
          %v1520 = vld [vmem:[#allocation2 + $0x20] sm:$0xff]
          %v1521 = vld [vmem:[#allocation2 + $0x60] sm:$0xff]
          %1524 = vrot.lane.b32.xlu0 %v1520, 64
          %v1525 = vpop.permute.xlu0 %1524
          %1526 = vrot.lane.b32.xlu0 %v1521, 64
          %v1527 = vpop.permute.xlu0 %1526
          %v1530 = vmul.f32 %v1520, %v1404
          %v1531 = vmul.f32 %v1521, %v1405
          %v1532 = vmul.f32 %v1525, %v1406
          %v1533 = vmul.f32 %v1527, %v1407
          %v1534 = vadd.f32 %v1530, %v1532
          %v1535 = vadd.f32 %v1531, %v1533
          %v1536 = vpack.c.bf16 %v1535, %v1534
          %v1538 = vunpack.c.l.b16 %v1536
          %v1539 = vunpack.c.h.b16 %v1536
          %v1540 = vpack.c.b16 %v1538, %v1538
          %v1541 = vpack.c.b16 %v1539, %v1539
          %1544 = vst [vmem:[#allocation12] sm:$0xf] %v1540
          %1545 = vst [vmem:[#allocation12 + $0x8] sm:$0xf] %v1541
          %v1546 = vld [vmem:[#allocation2 + $0x28] sm:$0xff]
          %v1547 = vld [vmem:[#allocation2 + $0x68] sm:$0xff]
          %1550 = vrot.lane.b32.xlu0 %v1546, 64
          %v1551 = vpop.permute.xlu0 %1550
          %1552 = vrot.lane.b32.xlu0 %v1547, 64
          %v1553 = vpop.permute.xlu0 %1552
          %v1556 = vmul.f32 %v1546, %v1404
          %v1557 = vmul.f32 %v1547, %v1405
          %v1558 = vmul.f32 %v1551, %v1406
          %v1559 = vmul.f32 %v1553, %v1407
          %v1560 = vadd.f32 %v1556, %v1558
          %v1561 = vadd.f32 %v1557, %v1559
          %v1562 = vpack.c.bf16 %v1561, %v1560
          %v1564 = vunpack.c.l.b16 %v1562
          %v1565 = vunpack.c.h.b16 %v1562
          %v1566 = vpack.c.b16 %v1564, %v1564
          %v1567 = vpack.c.b16 %v1565, %v1565
          %1570 = vst [vmem:[#allocation12 + $0x4] sm:$0xf] %v1566
          %1571 = vst [vmem:[#allocation12 + $0xc] sm:$0xf] %v1567
          %v1572 = vld [vmem:[#allocation2 + $0x30] sm:$0xff]
          %v1573 = vld [vmem:[#allocation2 + $0x38] sm:$0xff]
          %v1574 = vld [vmem:[#allocation2 + $0x70] sm:$0xff]
          %v1575 = vld [vmem:[#allocation2 + $0x78] sm:$0xff]
          %v1576 = vpack.c.bf16 %v1574, %v1572
          %v1577 = vpack.c.bf16 %v1575, %v1573
          %v1580 = vunpack.c.l.b16 %v1576
          %v1581 = vunpack.c.l.b16 %v1577
          %v1582 = vunpack.c.h.b16 %v1576
          %v1583 = vunpack.c.h.b16 %v1577
          %v1584 = vpack.c.b16 %v1581, %v1580
          %v1585 = vpack.c.b16 %v1583, %v1582
          %1588 = vst [vmem:[#allocation14] sm:$0xff] %v1584
          %1589 = vst [vmem:[#allocation14 + $0x8] sm:$0xff] %v1585
        $region60: #{tpu_custom_call.1} parent=35 // pred_fallthru
          _
        // Predicated region
        $region61: #{tpu_custom_call.1} parent=35 // pred_check
          %p1590 = pneg %p163
        $region62: #{tpu_custom_call.1} parent=35 // pred_check_branch
          %1592 = sbr.rel (%p1590) target = $region64
        $region63: #{tpu_custom_call.1} parent=35 // pred_region
          %s1593 = smul.u32 2, %s31
          %s1595 = ssub.s32 512, 512
          %1596 = vsyncadd [#allocation5], %s1595
          %s1597 = smul.addr %s1593, 4
          %s1598 = smul.addr %s1597, 64
          %s1599 = scalar_lea.hbm %s4, %s1598
          %s1600 = sshll.u32 [#allocation11], 4
          %s1601 = int_to_ptr.vmem [resolvable:$true] %s1600
          %1606 = dma.vmem_to_hbm [thread:$0]  %s1601, 512, %s1599, [#allocation5], 256, 256, 16
        $region64: #{tpu_custom_call.1} parent=35 // pred_fallthru
          _
        // Predicated region
        $region65: #{tpu_custom_call.1} parent=35 // pred_check
          %p1607 = pneg %p189
        $region66: #{tpu_custom_call.1} parent=35 // pred_check_branch
          %1609 = sbr.rel (%p1607) target = $region68
        $region67: #{tpu_custom_call.1} parent=35 // pred_region
          %s1610 = smul.u32 2, %s31
          %s1612 = ssub.s32 256, 256
          %1613 = vsyncadd [#allocation13], %s1612
          %s1614 = smul.addr %s1610, 2
          %s1615 = smul.addr %s1614, 64
          %s1616 = scalar_lea.hbm %s5, %s1615
          %s1617 = sshll.u32 [#allocation12], 4
          %s1618 = int_to_ptr.vmem [resolvable:$true] %s1617
          %1623 = dma.vmem_to_hbm [thread:$0]  %s1618, 256, %s1616, [#allocation13], 128, 128, 8
        $region68: #{tpu_custom_call.1} parent=35 // pred_fallthru
          _
        // Predicated region
        $region69: #{tpu_custom_call.1} parent=35 // pred_check
          %p1624 = pneg %p215
        $region70: #{tpu_custom_call.1} parent=35 // pred_check_branch
          %1626 = sbr.rel (%p1624) target = $region72
        $region71: #{tpu_custom_call.1} parent=35 // pred_region
          %s1627 = smul.u32 2, %s31
          %s1629 = ssub.s32 256, 256
          %1630 = vsyncadd [#allocation13], %s1629
          %s1631 = smul.addr %s1627, 2
          %s1632 = smul.addr %s1631, 64
          %s1633 = scalar_lea.hbm %s6, %s1632
          %s1634 = sshll.u32 [#allocation14], 4
          %s1635 = int_to_ptr.vmem [resolvable:$true] %s1634
          %1640 = dma.vmem_to_hbm [thread:$0]  %s1635, 256, %s1633, [#allocation13], 128, 128, 8
        $region72: #{tpu_custom_call.1} parent=35 // pred_fallthru
          _
        // Predicated region
        $region73: #{tpu_custom_call.1} parent=35 // pred_check
          %p1641 = pneg %p163
        $region74: #{tpu_custom_call.1} parent=35 // pred_check_branch
          %1643 = sbr.rel (%p1641) target = $region76
        $region75: #{tpu_custom_call.1} parent=35 // pred_region
          %1644 = dma.done [#allocation5], 512
        $region76: #{tpu_custom_call.1} parent=35 // pred_fallthru
          _
        // Predicated region
        $region77: #{tpu_custom_call.1} parent=35 // pred_check
          %p1645 = pneg %p189
        $region78: #{tpu_custom_call.1} parent=35 // pred_check_branch
          %1647 = sbr.rel (%p1645) target = $region80
        $region79: #{tpu_custom_call.1} parent=35 // pred_region
          %1648 = dma.done [#allocation13], 256
        $region80: #{tpu_custom_call.1} parent=35 // pred_fallthru
          _
        // Predicated region
        $region81: #{tpu_custom_call.1} parent=35 // pred_check
          %p1649 = pneg %p215
        $region82: #{tpu_custom_call.1} parent=35 // pred_check_branch
          %1651 = sbr.rel (%p1649) target = $region84
        $region83: #{tpu_custom_call.1} parent=35 // pred_region
          %1652 = dma.done [#allocation13], 256
        $region84: #{tpu_custom_call.1} parent=35 // pred_fallthru
          _
      $region36: #{tpu_custom_call.1} parent=5 // pred_fallthru
        _
      %p1653 = scmp.le.s32.totalorder 2, %s22
      // Predicated region
      $region85: #{tpu_custom_call.1} parent=5 // pred_check
        %p1654 = pneg %p1653
      $region86: #{tpu_custom_call.1} parent=5 // pred_check_branch
        %1656 = sbr.rel (%p1654) target = $region88
      $region87: #{tpu_custom_call.1} parent=5 // pred_region
        %s1657 = ssub.s32 %s22, 2
      $region88: #{tpu_custom_call.1} parent=5 // pred_fallthru
        _
    $region6: #{tpu_custom_call.1} parent=1 // loop_footer
      %s26 = sadd.s32 1, %s22
    $region7: #{tpu_custom_call.1} parent=1 // loop_footer_branch
      %21 = sbr.rel target = $region3
    $region8: #{tpu_custom_call.1} parent=1 // loop_exit
      _
    %1658 = vsyncpa [#allocation4], 1
    %s1659 = scalar_lea.sflag [#allocation4], 1
    %1660 = vsyncpa %s1659, 1
    %1661 = vsyncpa [#allocation7], 1
    %s1662 = scalar_lea.sflag [#allocation7], 1
    %1663 = vsyncpa %s1662, 1
    %1664 = vsyncpa [#allocation10], 1
    %1665 = vsyncpa [#allocation5], 1
    %s1666 = scalar_lea.sflag [#allocation5], 1
    %1667 = vsyncpa %s1666, 1
    %1668 = vsyncpa [#allocation13], 1

</llo_original>
